<compile_context>
chip_gen: v6e
topology: v6e:2x2x1
jax: 0.10.0
libtpu: 0.0.40
codegen_flags: <defaults>
</compile_context>

<pallas_src>
import functools

import numpy as np
import jax
import jax.numpy as jnp
from jax.experimental import pallas as pl
from jax.experimental.pallas import tpu as pltpu


def _round_up(x, m):
    return (int(x) + m - 1) // m * m


# ----------------------------------------------------------------------------
# Fused MHA kernel: one grid step == (one batch element, one Lq tile).
# ----------------------------------------------------------------------------
def _mha_kernel(*refs, n_head, d_k, d_v, d_out, fused_kv, skip_connection,
                need_weights, compute_dtype):
    f32 = jnp.float32
    cdt = compute_dtype

    it = iter(refs)
    q_ref = next(it)
    if fused_kv:
        kv_ref = next(it)
    else:
        k_ref = next(it)
        v_ref = next(it)
    bias_ref = next(it)
    wq_ref = next(it)
    bq_ref = next(it)
    if fused_kv:
        wkv_ref = next(it)
        bkv_ref = next(it)
    else:
        wk_ref = next(it)
        bk_ref = next(it)
        wv_ref = next(it)
        bv_ref = next(it)
    wfc_ref = next(it)
    bfc_ref = next(it)
    gamma_ref = next(it)
    beta_ref = next(it)
    out_ref = next(it)
    attn_ref = next(it) if need_weights else None

    xq = q_ref[0]                                   # (blq, Dq)  f32
    blq = xq.shape[0]
    lk = bias_ref.shape[2]

    # Hoisted additive-mask broadcast (0 / -1e30), shared by every head.
    bias = jnp.broadcast_to(bias_ref[0], (blq, lk))                 # (blq, lk)

    # Q projection: 1/temperature is already folded into wq / bq by the wrapper.
    qp = jnp.dot(xq.astype(cdt), wq_ref[...],
                 preferred_element_type=f32) + bq_ref[...]          # (blq, Hk)

    if fused_kv:
        # Fused [K | V] projection: one wide-N MXU matmul.
        kvp = jnp.dot(kv_ref[0], wkv_ref[...],
                      preferred_element_type=f32) + bkv_ref[...]    # (lk, Hk+Hv)
        kp = kvp
        vp = kvp
        v_off = n_head * d_k
    else:
        kp = jnp.dot(k_ref[0], wk_ref[...],
                     preferred_element_type=f32) + bk_ref[...]      # (lk, Hk)
        vp = jnp.dot(v_ref[0], wv_ref[...],
                     preferred_element_type=f32) + bv_ref[...]      # (lk, Hv)
        v_off = 0

    attn_acc = jnp.zeros((blq, lk), f32) if need_weights else None
    head_outs = []
    # Static unroll over heads (n_head is small).
    for h in range(n_head):
        qh = qp[:, h * d_k:(h + 1) * d_k].astype(cdt)               # (blq, d_k)
        kh = kp[:, h * d_k:(h + 1) * d_k].astype(cdt)               # (lk,  d_k)
        vh = vp[:, v_off + h * d_v:v_off + (h + 1) * d_v].astype(cdt)

        # scores = q @ k^T + mask_bias   (contract last dims, no transpose).
        s = jax.lax.dot_general(qh, kh, (((1,), (1,)), ((), ())),
                                preferred_element_type=f32)         # (blq, lk)
        s = s + bias

        # Softmax over keys (f32 VPU/EUP math; divide on the EUP slot).
        m = jnp.max(s, axis=-1, keepdims=True)
        e = jnp.exp(s - m)
        denom = jnp.sum(e, axis=-1, keepdims=True)
        p = e * pl.reciprocal(denom, approx=True)                   # (blq, lk)
        if need_weights:
            attn_acc = attn_acc + p

        head_outs.append(jnp.dot(p.astype(cdt), vh,
                                 preferred_element_type=f32))       # (blq, d_v)

    # Single wide-K output projection on the concatenated head outputs.
    concat = jnp.concatenate(head_outs, axis=-1).astype(cdt)        # (blq, Hv)
    y = jnp.dot(concat, wfc_ref[...],
                preferred_element_type=f32) + bfc_ref[...]          # (blq, d_out_p)
    if skip_connection:
        y = y + xq                              # residual (padded lanes are 0)

    # LayerNorm over the true d_out lanes only (padded lanes excluded).
    d_out_p = y.shape[1]
    if d_out_p == d_out:
        mu = jnp.mean(y, axis=-1, keepdims=True)
        diff = y - mu
        var = jnp.mean(diff * diff, axis=-1, keepdims=True)
    else:
        lane = jax.lax.broadcasted_iota(jnp.int32, (1, d_out_p), 1)
        valid = lane < d_out
        inv_n = 1.0 / d_out
        mu = jnp.sum(jnp.where(valid, y, 0.0), axis=-1, keepdims=True) * inv_n
        diff = jnp.where(valid, y - mu, 0.0)
        var = jnp.sum(diff * diff, axis=-1, keepdims=True) * inv_n
    y = (y - mu) * jax.lax.rsqrt(var + 1e-5)
    out_ref[0] = y * gamma_ref[...] + beta_ref[...]

    if need_weights:
        attn_ref[0] = (attn_acc * (1.0 / n_head)).astype(attn_ref.dtype)


# ----------------------------------------------------------------------------
# Wrapper: pads to lane-dense shapes, pre-casts to bf16, one pallas_call.
# ----------------------------------------------------------------------------
def multi_head_attention(params, q, k, v, key_padding_mask=None, *,
                         need_weights=True, attn_dtype=jnp.float32,
                         skip_connection=True, block_lq=None,
                         compute_dtype=jnp.bfloat16):
    f32 = jnp.float32
    cdt = compute_dtype

    n_head = params["n_head"]
    d_k = params["d_k"]
    d_v = params["d_v"]
    temperature = params["temperature"]
    Hk, Hv = n_head * d_k, n_head * d_v

    B, Lq, d_model = q.shape
    Lk = k.shape[1]
    d_out = params["w_fc"].shape[1]
    skip = bool(skip_connection) and (d_out == d_model)   # module forces False if d_out != d_model
    fused_kv = k is v                                     # self-attention / k = clone(v) case

    # ---- padded / tiled sizes (lane-dense outputs, 8-aligned Lq tiles) ----
    Lk_p = _round_up(Lk, 128)
    d_out_p = _round_up(d_out, 128)
    if block_lq is None:
        block_lq = Lq if Lq <= 256 else 256
    block_lq = _round_up(min(block_lq, Lq), 8)
    Lq_p = _round_up(Lq, block_lq)
    d_model_q = d_out_p if skip else d_model              # residual needs q lanes == d_out_p

    # ---- parameters: fold 1/temperature into Q proj, pad, pre-cast to bf16 ----
    inv_t = np.float32(1.0 / temperature)
    w_q = params["w_qs"].astype(f32) * inv_t
    b_q = params["b_qs"].astype(f32) * inv_t
    if d_model_q > d_model:
        w_q = jnp.pad(w_q, ((0, d_model_q - d_model), (0, 0)))
    w_q = w_q.astype(cdt)

    w_fc = jnp.pad(params["w_fc"].astype(f32),
                   ((0, 0), (0, d_out_p - d_out))).astype(cdt)
    b_fc = jnp.pad(params["b_fc"].astype(f32), ((0, 0), (0, d_out_p - d_out)))
    gamma = jnp.pad(params["ln_gamma"].astype(f32), ((0, 0), (0, d_out_p - d_out)))
    beta = jnp.pad(params["ln_beta"].astype(f32), ((0, 0), (0, d_out_p - d_out)))

    if fused_kv:
        w_kv = jnp.concatenate([params["w_ks"], params["w_vs"]], axis=1).astype(cdt)
        b_kv = jnp.concatenate([params["b_ks"], params["b_vs"]], axis=1).astype(f32)
    else:
        w_k = params["w_ks"].astype(cdt)
        b_k = params["b_ks"].astype(f32)
        w_v = params["w_vs"].astype(cdt)
        b_v = params["b_vs"].astype(f32)

    # ---- inputs: pad + pre-cast (q stays f32 for the residual) ----
    q_in = q.astype(f32)
    if Lq_p > Lq or d_model_q > d_model:
        q_in = jnp.pad(q_in, ((0, 0), (0, Lq_p - Lq), (0, d_model_q - d_model)))

    def _prep_kv(x):
        if Lk_p > Lk:
            x = jnp.pad(x, ((0, 0), (0, Lk_p - Lk), (0, 0)))
        return x.astype(cdt)

    if fused_kv:
        kv_in = _prep_kv(k)
    else:
        k_in = _prep_kv(k)
        v_in = _prep_kv(v)

    # key_padding_mask (B, Lk) bool + key padding -> additive bias (B, 1, Lk_p).
    neg = np.float32(-1e30)
    if key_padding_mask is None:
        bias = jnp.zeros((B, Lk), f32)
    else:
        bias = jnp.where(key_padding_mask, neg, np.float32(0.0)).astype(f32)
    if Lk_p > Lk:
        bias = jnp.concatenate([bias, jnp.full((B, Lk_p - Lk), neg, f32)], axis=1)
    bias = bias.reshape(B, 1, Lk_p)

    # ---- grid / specs ----
    n_lq = Lq_p // block_lq
    grid = (B, n_lq)

    def full2d(shape):
        return pl.BlockSpec(shape, lambda b, i: (0, 0))

    args = [q_in]
    in_specs = [pl.BlockSpec((1, block_lq, d_model_q), lambda b, i: (b, i, 0))]
    if fused_kv:
        args += [kv_in]
        in_specs += [pl.BlockSpec((1, Lk_p, d_model), lambda b, i: (b, 0, 0))]
    else:
        args += [k_in, v_in]
        in_specs += [pl.BlockSpec((1, Lk_p, d_model), lambda b, i: (b, 0, 0)),
                     pl.BlockSpec((1, Lk_p, d_model), lambda b, i: (b, 0, 0))]
    args += [bias]
    in_specs += [pl.BlockSpec((1, 1, Lk_p), lambda b, i: (b, 0, 0))]
    args += [w_q, b_q]
    in_specs += [full2d((d_model_q, Hk)), full2d((1, Hk))]
    if fused_kv:
        args += [w_kv, b_kv]
        in_specs += [full2d((d_model, Hk + Hv)), full2d((1, Hk + Hv))]
    else:
        args += [w_k, b_k, w_v, b_v]
        in_specs += [full2d((d_model, Hk)), full2d((1, Hk)),
                     full2d((d_model, Hv)), full2d((1, Hv))]
    args += [w_fc, b_fc, gamma, beta]
    in_specs += [full2d((Hv, d_out_p)), full2d((1, d_out_p)),
                 full2d((1, d_out_p)), full2d((1, d_out_p))]

    out_shapes = [jax.ShapeDtypeStruct((B, Lq_p, d_out_p), f32)]
    out_specs = [pl.BlockSpec((1, block_lq, d_out_p), lambda b, i: (b, i, 0))]
    if need_weights:
        out_shapes.append(jax.ShapeDtypeStruct((B, Lq_p, Lk_p), attn_dtype))
        out_specs.append(pl.BlockSpec((1, block_lq, Lk_p), lambda b, i: (b, i, 0)))

    kernel = functools.partial(
        _mha_kernel,
        n_head=n_head, d_k=d_k, d_v=d_v, d_out=int(d_out),
        fused_kv=fused_kv, skip_connection=skip,
        need_weights=need_weights, compute_dtype=cdt)

    results = pl.pallas_call(
        kernel,
        out_shape=tuple(out_shapes),
        grid=grid,
        in_specs=in_specs,
        out_specs=tuple(out_specs),
        compiler_params=pltpu.CompilerParams(
            dimension_semantics=("parallel", "parallel"),
            vmem_limit_bytes=64 * 1024 * 1024),
    )(*args)

    out = results[0][:, :Lq, :d_out]
    if need_weights:
        attn = results[1][:, :Lq, :Lk]
        return out, attn
    return out


# ----------------------------------------------------------------------------
# Pure-JAX f32 reference (mirrors the PyTorch module's forward, skip=True).
# ----------------------------------------------------------------------------
def mha_reference(params, q, k, v, key_padding_mask=None):
    H, d_k, d_v = params["n_head"], params["d_k"], params["d_v"]
    B, Lq, _ = q.shape
    Lk = k.shape[1]
    qp = q @ params["w_qs"] + params["b_qs"]
    kp = k @ params["w_ks"] + params["b_ks"]
    vp = v @ params["w_vs"] + params["b_vs"]
    qh = qp.reshape(B, Lq, H, d_k).transpose(2, 0, 1, 3)
    kh = kp.reshape(B, Lk, H, d_k).transpose(2, 0, 1, 3)
    vh = vp.reshape(B, Lk, H, d_v).transpose(2, 0, 1, 3)
    s = jnp.einsum("hbqd,hbkd->hbqk", qh, kh) / params["temperature"]
    if key_padding_mask is not None:
        s = s + jnp.where(key_padding_mask, -1e30, 0.0)[None, :, None, :]
    p = jax.nn.softmax(s, axis=-1)
    oh = jnp.einsum("hbqk,hbkd->hbqd", p, vh)
    concat = oh.transpose(1, 2, 0, 3).reshape(B, Lq, H * d_v)
    y = concat @ params["w_fc"] + params["b_fc"] + q
    mu = y.mean(-1, keepdims=True)
    var = ((y - mu) ** 2).mean(-1, keepdims=True)
    y = (y - mu) * jax.lax.rsqrt(var + 1e-5)
    y = y * params["ln_gamma"] + params["ln_beta"]
    return y, p.mean(axis=0)


# ----------------------------------------------------------------------------
# Deterministic parameter construction (shapes from MultiHeadAttention.__init__)
# ----------------------------------------------------------------------------
def make_params(key, n_head, d_model, d_k, d_v, d_out=None):
    if d_out is None:
        d_out = d_model
    ks = jax.random.split(key, 8)
    std_qk = np.sqrt(2.0 / (d_model + d_k))
    std_v = np.sqrt(2.0 / (d_model + d_v))
    std_fc = np.sqrt(2.0 / (n_head * d_v + d_out))           # xavier_normal_
    return {
        "n_head": n_head, "d_k": d_k, "d_v": d_v,
        "temperature": float(np.power(d_k, 0.5)),
        "w_qs": (std_qk * jax.random.normal(ks[0], (d_model, n_head * d_k))).astype(jnp.float32),
        "b_qs": (0.01 * jax.random.normal(ks[1], (1, n_head * d_k))).astype(jnp.float32),
        "w_ks": (std_qk * jax.random.normal(ks[2], (d_model, n_head * d_k))).astype(jnp.float32),
        "b_ks": (0.01 * jax.random.normal(ks[3], (1, n_head * d_k))).astype(jnp.float32),
        "w_vs": (std_v * jax.random.normal(ks[4], (d_model, n_head * d_v))).astype(jnp.float32),
        "b_vs": (0.01 * jax.random.normal(ks[5], (1, n_head * d_v))).astype(jnp.float32),
        "w_fc": (std_fc * jax.random.normal(ks[6], (n_head * d_v, d_out))).astype(jnp.float32),
        "b_fc": (0.01 * jax.random.normal(ks[7], (1, d_out))).astype(jnp.float32),
        "ln_gamma": jnp.ones((1, d_out), jnp.float32),
        "ln_beta": jnp.zeros((1, d_out), jnp.float32),
    }


if __name__ == "__main__":
    # Small shapes consistent with the module's forward.
    B, Lq, Lk = 2, 16, 8
    d_model, d_k, d_v, n_head = 32, 8, 8, 4

    key = jax.random.PRNGKey(0)
    kq, kv_, kp_ = jax.random.split(key, 3)

    q = jax.random.uniform(kq, (B, Lq, d_model), dtype=jnp.float32)
    v = jax.random.uniform(kv_, (B, Lk, d_model), dtype=jnp.float32)
    k = v  # k = clone(v), as in the docstring example -> fused K/V projection path

    # key_padding_mask: mask out the last key of the last batch element.
    key_padding_mask = jnp.zeros((B, Lk), dtype=bool).at[B - 1, Lk - 1].set(True)

    params = make_params(kp_, n_head, d_model, d_k, d_v)

    out, attn = multi_head_attention(params, q, k, v,
                                     key_padding_mask=key_padding_mask)
    out = jax.block_until_ready(out)
    attn = jax.block_until_ready(attn)

    assert out.shape == (B, Lq, d_model), out.shape
    assert attn.shape == (B, Lq, Lk), attn.shape

    out_np = np.asarray(out)
    attn_np = np.asarray(attn)
    assert np.isfinite(out_np).all()
    # attention rows are softmaxed (sum ~ 1; EUP approx reciprocal); masked key
    # column is exactly 0.
    assert np.allclose(attn_np.sum(axis=2), 1.0, atol=1e-2)
    assert np.allclose(attn_np[B - 1, :, Lk - 1], 0.0)

    # Compare against pure-JAX f32 reference (bf16 MXU operands -> loose tol).
    out_ref, attn_ref = mha_reference(params, q, k, v,
                                      key_padding_mask=key_padding_mask)
    assert np.allclose(out_np, np.asarray(out_ref), atol=1e-1)
    assert np.allclose(attn_np, np.asarray(attn_ref), atol=2e-2)

    # Non-fused K/V path (distinct k array) must agree with the fused path.
    k2 = v + 0.0
    out2, attn2 = multi_head_attention(params, q, k2, v,
                                       key_padding_mask=key_padding_mask)
    out2 = jax.block_until_ready(out2)
    assert np.allclose(np.asarray(out2), out_np, atol=2e-3)
    assert np.allclose(np.asarray(attn2), attn_np, atol=2e-3)

    # need_weights=False fast path (skips the (B,Lq,Lk) output entirely).
    out3 = multi_head_attention(params, q, k, v,
                                key_padding_mask=key_padding_mask,
                                need_weights=False)
    out3 = jax.block_until_ready(out3)
    assert out3.shape == (B, Lq, d_model)
    assert np.allclose(np.asarray(out3), out_np, atol=2e-3)

    print("KERNEL_OK")
</pallas_src>

<mosaic_0001>
module attributes {stable_mosaic.version = 11 : i64} {
  func.func @_mha_kernel(%arg0: i32, %arg1: i32, %arg2: memref<1x16x128xf32, #tpu.memory_space<vmem>>, %arg3: memref<1x128x32xbf16, #tpu.memory_space<vmem>>, %arg4: memref<1x1x128xf32, #tpu.memory_space<vmem>>, %arg5: memref<128x32xbf16, #tpu.memory_space<vmem>>, %arg6: memref<1x32xf32, #tpu.memory_space<vmem>>, %arg7: memref<32x64xbf16, #tpu.memory_space<vmem>>, %arg8: memref<1x64xf32, #tpu.memory_space<vmem>>, %arg9: memref<32x128xbf16, #tpu.memory_space<vmem>>, %arg10: memref<1x128xf32, #tpu.memory_space<vmem>>, %arg11: memref<1x128xf32, #tpu.memory_space<vmem>>, %arg12: memref<1x128xf32, #tpu.memory_space<vmem>>, %arg13: memref<1x16x128xf32, #tpu.memory_space<vmem>>, %arg14: memref<1x16x128xf32, #tpu.memory_space<vmem>>) attributes {dimension_semantics = [#tpu.dimension_semantics<parallel>, #tpu.dimension_semantics<parallel>], iteration_bounds = array<i64: 2, 1>, scalar_prefetch = 0 : i64, scratch_operands = 0 : i64, tpu.core_type = #tpu.core_type<tc>, window_params = [{transform_indices = @transform_0, window_bounds = array<i64: 1, 16, 128>}, {transform_indices = @transform_1, window_bounds = array<i64: 1, 128, 32>}, {transform_indices = @transform_2, window_bounds = array<i64: 1, 1, 128>}, {pipeline_mode = #tpu.pipeline_mode<synchronous>, transform_indices = @transform_3, window_bounds = array<i64: 128, 32>}, {pipeline_mode = #tpu.pipeline_mode<synchronous>, transform_indices = @transform_4, window_bounds = array<i64: 1, 32>}, {pipeline_mode = #tpu.pipeline_mode<synchronous>, transform_indices = @transform_5, window_bounds = array<i64: 32, 64>}, {pipeline_mode = #tpu.pipeline_mode<synchronous>, transform_indices = @transform_6, window_bounds = array<i64: 1, 64>}, {pipeline_mode = #tpu.pipeline_mode<synchronous>, transform_indices = @transform_7, window_bounds = array<i64: 32, 128>}, {pipeline_mode = #tpu.pipeline_mode<synchronous>, transform_indices = @transform_8, window_bounds = array<i64: 1, 128>}, {pipeline_mode = #tpu.pipeline_mode<synchronous>, transform_indices = @transform_9, window_bounds = array<i64: 1, 128>}, {pipeline_mode = #tpu.pipeline_mode<synchronous>, transform_indices = @transform_10, window_bounds = array<i64: 1, 128>}, {transform_indices = @transform_11, window_bounds = array<i64: 1, 16, 128>}, {transform_indices = @transform_12, window_bounds = array<i64: 1, 16, 128>}]} {
    %c0 = arith.constant 0 : index
    %c0_0 = arith.constant 0 : index
    %c0_1 = arith.constant 0 : index
    %0 = vector.load %arg2[%c0, %c0_0, %c0_1] : memref<1x16x128xf32, #tpu.memory_space<vmem>>, vector<1x16x128xf32>
    %1 = vector.shape_cast %0 : vector<1x16x128xf32> to vector<16x128xf32>
    %c0_2 = arith.constant 0 : index
    %c0_3 = arith.constant 0 : index
    %c0_4 = arith.constant 0 : index
    %2 = vector.load %arg4[%c0_2, %c0_3, %c0_4] : memref<1x1x128xf32, #tpu.memory_space<vmem>>, vector<1x1x128xf32>
    %3 = vector.shape_cast %2 : vector<1x1x128xf32> to vector<1x128xf32>
    %4 = vector.shape_cast %3 : vector<1x128xf32> to vector<1x128xf32>
    %5 = vector.broadcast %4 : vector<1x128xf32> to vector<16x128xf32>
    %6 = arith.truncf %1 : vector<16x128xf32> to vector<16x128xbf16>
    %c0_5 = arith.constant 0 : index
    %c0_6 = arith.constant 0 : index
    %7 = vector.load %arg5[%c0_5, %c0_6] : memref<128x32xbf16, #tpu.memory_space<vmem>>, vector<128x32xbf16>
    %cst = arith.constant dense<0.000000e+00> : vector<16x32xf32>
    %8 = tpu.matmul %6, %7, %cst {dimension_numbers = #tpu.dot_dimension_numbers<[1], [0], [0], [1], [0, 0, 1, 1], [], []>} : vector<16x128xbf16>, vector<128x32xbf16>, vector<16x32xf32> -> vector<16x32xf32>
    %c0_7 = arith.constant 0 : index
    %c0_8 = arith.constant 0 : index
    %9 = vector.load %arg6[%c0_7, %c0_8] : memref<1x32xf32, #tpu.memory_space<vmem>>, vector<1x32xf32>
    %10 = vector.broadcast %9 : vector<1x32xf32> to vector<16x32xf32>
    %11 = arith.addf %8, %10 : vector<16x32xf32>
    %c0_9 = arith.constant 0 : index
    %c0_10 = arith.constant 0 : index
    %c0_11 = arith.constant 0 : index
    %12 = vector.load %arg3[%c0_9, %c0_10, %c0_11] : memref<1x128x32xbf16, #tpu.memory_space<vmem>>, vector<1x128x32xbf16>
    %13 = vector.shape_cast %12 : vector<1x128x32xbf16> to vector<128x32xbf16>
    %c0_12 = arith.constant 0 : index
    %c0_13 = arith.constant 0 : index
    %14 = vector.load %arg7[%c0_12, %c0_13] : memref<32x64xbf16, #tpu.memory_space<vmem>>, vector<32x64xbf16>
    %cst_14 = arith.constant dense<0.000000e+00> : vector<128x64xf32>
    %15 = tpu.matmul %13, %14, %cst_14 {dimension_numbers = #tpu.dot_dimension_numbers<[1], [0], [0], [1], [0, 0, 1, 1], [], []>} : vector<128x32xbf16>, vector<32x64xbf16>, vector<128x64xf32> -> vector<128x64xf32>
    %c0_15 = arith.constant 0 : index
    %c0_16 = arith.constant 0 : index
    %16 = vector.load %arg8[%c0_15, %c0_16] : memref<1x64xf32, #tpu.memory_space<vmem>>, vector<1x64xf32>
    %17 = vector.broadcast %16 : vector<1x64xf32> to vector<128x64xf32>
    %18 = arith.addf %15, %17 : vector<128x64xf32>
    %cst_17 = arith.constant 0.000000e+00 : f32
    %19 = vector.broadcast %cst_17 : f32 to vector<16x128xf32>
    %20 = vector.extract_strided_slice %11 {offsets = [0, 0], sizes = [16, 8], strides = [1, 1]} : vector<16x32xf32> to vector<16x8xf32>
    %21 = arith.truncf %20 : vector<16x8xf32> to vector<16x8xbf16>
    %22 = vector.extract_strided_slice %18 {offsets = [0, 0], sizes = [128, 8], strides = [1, 1]} : vector<128x64xf32> to vector<128x8xf32>
    %23 = arith.truncf %22 : vector<128x8xf32> to vector<128x8xbf16>
    %24 = vector.extract_strided_slice %18 {offsets = [0, 32], sizes = [128, 8], strides = [1, 1]} : vector<128x64xf32> to vector<128x8xf32>
    %25 = arith.truncf %24 : vector<128x8xf32> to vector<128x8xbf16>
    %cst_18 = arith.constant dense<0.000000e+00> : vector<16x128xf32>
    %26 = tpu.matmul %21, %23, %cst_18 {dimension_numbers = #tpu.dot_dimension_numbers<[1], [1], [0], [0], [0, 0, 1, 0], [], []>} : vector<16x8xbf16>, vector<128x8xbf16>, vector<16x128xf32> -> vector<16x128xf32>
    %27 = arith.addf %26, %5 : vector<16x128xf32>
    %cst_19 = arith.constant dense<0xFF800000> : vector<16xf32>
    %28 = vector.multi_reduction <maximumf>, %27, %cst_19 [1] : vector<16x128xf32> to vector<16xf32>
    %29 = vector.shape_cast %28 : vector<16xf32> to vector<16x1xf32>
    %30 = vector.broadcast %29 : vector<16x1xf32> to vector<16x128xf32>
    %31 = arith.subf %27, %30 : vector<16x128xf32>
    %32 = math.exp %31 : vector<16x128xf32>
    %cst_20 = arith.constant dense<0.000000e+00> : vector<16xf32>
    %33 = vector.multi_reduction <add>, %32, %cst_20 [1] : vector<16x128xf32> to vector<16xf32>
    %34 = vector.shape_cast %33 : vector<16xf32> to vector<16x1xf32>
    %35 = tpu.reciprocal %34 {approx = true} : vector<16x1xf32> -> vector<16x1xf32>
    %36 = vector.broadcast %35 : vector<16x1xf32> to vector<16x128xf32>
    %37 = arith.mulf %32, %36 : vector<16x128xf32>
    %38 = arith.addf %19, %37 : vector<16x128xf32>
    %39 = arith.truncf %37 : vector<16x128xf32> to vector<16x128xbf16>
    %cst_21 = arith.constant dense<0.000000e+00> : vector<16x8xf32>
    %40 = tpu.matmul %39, %25, %cst_21 {dimension_numbers = #tpu.dot_dimension_numbers<[1], [0], [0], [1], [0, 0, 1, 1], [], []>} : vector<16x128xbf16>, vector<128x8xbf16>, vector<16x8xf32> -> vector<16x8xf32>
    %41 = vector.extract_strided_slice %11 {offsets = [0, 8], sizes = [16, 8], strides = [1, 1]} : vector<16x32xf32> to vector<16x8xf32>
    %42 = arith.truncf %41 : vector<16x8xf32> to vector<16x8xbf16>
    %43 = vector.extract_strided_slice %18 {offsets = [0, 8], sizes = [128, 8], strides = [1, 1]} : vector<128x64xf32> to vector<128x8xf32>
    %44 = arith.truncf %43 : vector<128x8xf32> to vector<128x8xbf16>
    %45 = vector.extract_strided_slice %18 {offsets = [0, 40], sizes = [128, 8], strides = [1, 1]} : vector<128x64xf32> to vector<128x8xf32>
    %46 = arith.truncf %45 : vector<128x8xf32> to vector<128x8xbf16>
    %cst_22 = arith.constant dense<0.000000e+00> : vector<16x128xf32>
    %47 = tpu.matmul %42, %44, %cst_22 {dimension_numbers = #tpu.dot_dimension_numbers<[1], [1], [0], [0], [0, 0, 1, 0], [], []>} : vector<16x8xbf16>, vector<128x8xbf16>, vector<16x128xf32> -> vector<16x128xf32>
    %48 = arith.addf %47, %5 : vector<16x128xf32>
    %cst_23 = arith.constant dense<0xFF800000> : vector<16xf32>
    %49 = vector.multi_reduction <maximumf>, %48, %cst_23 [1] : vector<16x128xf32> to vector<16xf32>
    %50 = vector.shape_cast %49 : vector<16xf32> to vector<16x1xf32>
    %51 = vector.broadcast %50 : vector<16x1xf32> to vector<16x128xf32>
    %52 = arith.subf %48, %51 : vector<16x128xf32>
    %53 = math.exp %52 : vector<16x128xf32>
    %cst_24 = arith.constant dense<0.000000e+00> : vector<16xf32>
    %54 = vector.multi_reduction <add>, %53, %cst_24 [1] : vector<16x128xf32> to vector<16xf32>
    %55 = vector.shape_cast %54 : vector<16xf32> to vector<16x1xf32>
    %56 = tpu.reciprocal %55 {approx = true} : vector<16x1xf32> -> vector<16x1xf32>
    %57 = vector.broadcast %56 : vector<16x1xf32> to vector<16x128xf32>
    %58 = arith.mulf %53, %57 : vector<16x128xf32>
    %59 = arith.addf %38, %58 : vector<16x128xf32>
    %60 = arith.truncf %58 : vector<16x128xf32> to vector<16x128xbf16>
    %cst_25 = arith.constant dense<0.000000e+00> : vector<16x8xf32>
    %61 = tpu.matmul %60, %46, %cst_25 {dimension_numbers = #tpu.dot_dimension_numbers<[1], [0], [0], [1], [0, 0, 1, 1], [], []>} : vector<16x128xbf16>, vector<128x8xbf16>, vector<16x8xf32> -> vector<16x8xf32>
    %62 = vector.extract_strided_slice %11 {offsets = [0, 16], sizes = [16, 8], strides = [1, 1]} : vector<16x32xf32> to vector<16x8xf32>
    %63 = arith.truncf %62 : vector<16x8xf32> to vector<16x8xbf16>
    %64 = vector.extract_strided_slice %18 {offsets = [0, 16], sizes = [128, 8], strides = [1, 1]} : vector<128x64xf32> to vector<128x8xf32>
    %65 = arith.truncf %64 : vector<128x8xf32> to vector<128x8xbf16>
    %66 = vector.extract_strided_slice %18 {offsets = [0, 48], sizes = [128, 8], strides = [1, 1]} : vector<128x64xf32> to vector<128x8xf32>
    %67 = arith.truncf %66 : vector<128x8xf32> to vector<128x8xbf16>
    %cst_26 = arith.constant dense<0.000000e+00> : vector<16x128xf32>
    %68 = tpu.matmul %63, %65, %cst_26 {dimension_numbers = #tpu.dot_dimension_numbers<[1], [1], [0], [0], [0, 0, 1, 0], [], []>} : vector<16x8xbf16>, vector<128x8xbf16>, vector<16x128xf32> -> vector<16x128xf32>
    %69 = arith.addf %68, %5 : vector<16x128xf32>
    %cst_27 = arith.constant dense<0xFF800000> : vector<16xf32>
    %70 = vector.multi_reduction <maximumf>, %69, %cst_27 [1] : vector<16x128xf32> to vector<16xf32>
    %71 = vector.shape_cast %70 : vector<16xf32> to vector<16x1xf32>
    %72 = vector.broadcast %71 : vector<16x1xf32> to vector<16x128xf32>
    %73 = arith.subf %69, %72 : vector<16x128xf32>
    %74 = math.exp %73 : vector<16x128xf32>
    %cst_28 = arith.constant dense<0.000000e+00> : vector<16xf32>
    %75 = vector.multi_reduction <add>, %74, %cst_28 [1] : vector<16x128xf32> to vector<16xf32>
    %76 = vector.shape_cast %75 : vector<16xf32> to vector<16x1xf32>
    %77 = tpu.reciprocal %76 {approx = true} : vector<16x1xf32> -> vector<16x1xf32>
    %78 = vector.broadcast %77 : vector<16x1xf32> to vector<16x128xf32>
    %79 = arith.mulf %74, %78 : vector<16x128xf32>
    %80 = arith.addf %59, %79 : vector<16x128xf32>
    %81 = arith.truncf %79 : vector<16x128xf32> to vector<16x128xbf16>
    %cst_29 = arith.constant dense<0.000000e+00> : vector<16x8xf32>
    %82 = tpu.matmul %81, %67, %cst_29 {dimension_numbers = #tpu.dot_dimension_numbers<[1], [0], [0], [1], [0, 0, 1, 1], [], []>} : vector<16x128xbf16>, vector<128x8xbf16>, vector<16x8xf32> -> vector<16x8xf32>
    %83 = vector.extract_strided_slice %11 {offsets = [0, 24], sizes = [16, 8], strides = [1, 1]} : vector<16x32xf32> to vector<16x8xf32>
    %84 = arith.truncf %83 : vector<16x8xf32> to vector<16x8xbf16>
    %85 = vector.extract_strided_slice %18 {offsets = [0, 24], sizes = [128, 8], strides = [1, 1]} : vector<128x64xf32> to vector<128x8xf32>
    %86 = arith.truncf %85 : vector<128x8xf32> to vector<128x8xbf16>
    %87 = vector.extract_strided_slice %18 {offsets = [0, 56], sizes = [128, 8], strides = [1, 1]} : vector<128x64xf32> to vector<128x8xf32>
    %88 = arith.truncf %87 : vector<128x8xf32> to vector<128x8xbf16>
    %cst_30 = arith.constant dense<0.000000e+00> : vector<16x128xf32>
    %89 = tpu.matmul %84, %86, %cst_30 {dimension_numbers = #tpu.dot_dimension_numbers<[1], [1], [0], [0], [0, 0, 1, 0], [], []>} : vector<16x8xbf16>, vector<128x8xbf16>, vector<16x128xf32> -> vector<16x128xf32>
    %90 = arith.addf %89, %5 : vector<16x128xf32>
    %cst_31 = arith.constant dense<0xFF800000> : vector<16xf32>
    %91 = vector.multi_reduction <maximumf>, %90, %cst_31 [1] : vector<16x128xf32> to vector<16xf32>
    %92 = vector.shape_cast %91 : vector<16xf32> to vector<16x1xf32>
    %93 = vector.broadcast %92 : vector<16x1xf32> to vector<16x128xf32>
    %94 = arith.subf %90, %93 : vector<16x128xf32>
    %95 = math.exp %94 : vector<16x128xf32>
    %cst_32 = arith.constant dense<0.000000e+00> : vector<16xf32>
    %96 = vector.multi_reduction <add>, %95, %cst_32 [1] : vector<16x128xf32> to vector<16xf32>
    %97 = vector.shape_cast %96 : vector<16xf32> to vector<16x1xf32>
    %98 = tpu.reciprocal %97 {approx = true} : vector<16x1xf32> -> vector<16x1xf32>
    %99 = vector.broadcast %98 : vector<16x1xf32> to vector<16x128xf32>
    %100 = arith.mulf %95, %99 : vector<16x128xf32>
    %101 = arith.addf %80, %100 : vector<16x128xf32>
    %102 = arith.truncf %100 : vector<16x128xf32> to vector<16x128xbf16>
    %cst_33 = arith.constant dense<0.000000e+00> : vector<16x8xf32>
    %103 = tpu.matmul %102, %88, %cst_33 {dimension_numbers = #tpu.dot_dimension_numbers<[1], [0], [0], [1], [0, 0, 1, 1], [], []>} : vector<16x128xbf16>, vector<128x8xbf16>, vector<16x8xf32> -> vector<16x8xf32>
    %104 = tpu.concatenate %40, %61, %82, %103 in 1 : vector<16x8xf32>, vector<16x8xf32>, vector<16x8xf32>, vector<16x8xf32> -> vector<16x32xf32>
    %105 = arith.truncf %104 : vector<16x32xf32> to vector<16x32xbf16>
    %c0_34 = arith.constant 0 : index
    %c0_35 = arith.constant 0 : index
    %106 = vector.load %arg9[%c0_34, %c0_35] : memref<32x128xbf16, #tpu.memory_space<vmem>>, vector<32x128xbf16>
    %cst_36 = arith.constant dense<0.000000e+00> : vector<16x128xf32>
    %107 = tpu.matmul %105, %106, %cst_36 {dimension_numbers = #tpu.dot_dimension_numbers<[1], [0], [0], [1], [0, 0, 1, 1], [], []>} : vector<16x32xbf16>, vector<32x128xbf16>, vector<16x128xf32> -> vector<16x128xf32>
    %c0_37 = arith.constant 0 : index
    %c0_38 = arith.constant 0 : index
    %108 = vector.load %arg10[%c0_37, %c0_38] : memref<1x128xf32, #tpu.memory_space<vmem>>, vector<1x128xf32>
    %109 = vector.broadcast %108 : vector<1x128xf32> to vector<16x128xf32>
    %110 = arith.addf %107, %109 : vector<16x128xf32>
    %111 = arith.addf %110, %1 : vector<16x128xf32>
    %112 = tpu.iota {dimensions = array<i32: 1>} : vector<1x128xi32>
    %c32_i32 = arith.constant 32 : i32
    %113 = vector.broadcast %c32_i32 : i32 to vector<1x128xi32>
    %114 = arith.cmpi slt, %112, %113 : vector<1x128xi32>
    %cst_39 = arith.constant 0.000000e+00 : f32
    %115 = vector.shape_cast %114 : vector<1x128xi1> to vector<1x128xi1>
    %116 = vector.broadcast %115 : vector<1x128xi1> to vector<16x128xi1>
    %117 = vector.broadcast %cst_39 : f32 to vector<16x128xf32>
    %118 = arith.select %116, %111, %117 : vector<16x128xi1>, vector<16x128xf32>
    %cst_40 = arith.constant dense<0.000000e+00> : vector<16xf32>
    %119 = vector.multi_reduction <add>, %118, %cst_40 [1] : vector<16x128xf32> to vector<16xf32>
    %120 = vector.shape_cast %119 : vector<16xf32> to vector<16x1xf32>
    %cst_41 = arith.constant 3.125000e-02 : f32
    %121 = vector.broadcast %cst_41 : f32 to vector<16x1xf32>
    %122 = arith.mulf %120, %121 : vector<16x1xf32>
    %123 = vector.broadcast %122 : vector<16x1xf32> to vector<16x128xf32>
    %124 = arith.subf %111, %123 : vector<16x128xf32>
    %cst_42 = arith.constant 0.000000e+00 : f32
    %125 = vector.shape_cast %114 : vector<1x128xi1> to vector<1x128xi1>
    %126 = vector.broadcast %125 : vector<1x128xi1> to vector<16x128xi1>
    %127 = vector.broadcast %cst_42 : f32 to vector<16x128xf32>
    %128 = arith.select %126, %124, %127 : vector<16x128xi1>, vector<16x128xf32>
    %129 = arith.mulf %128, %128 : vector<16x128xf32>
    %cst_43 = arith.constant dense<0.000000e+00> : vector<16xf32>
    %130 = vector.multi_reduction <add>, %129, %cst_43 [1] : vector<16x128xf32> to vector<16xf32>
    %131 = vector.shape_cast %130 : vector<16xf32> to vector<16x1xf32>
    %cst_44 = arith.constant 3.125000e-02 : f32
    %132 = vector.broadcast %cst_44 : f32 to vector<16x1xf32>
    %133 = arith.mulf %131, %132 : vector<16x1xf32>
    %134 = vector.broadcast %122 : vector<16x1xf32> to vector<16x128xf32>
    %135 = arith.subf %111, %134 : vector<16x128xf32>
    %cst_45 = arith.constant 9.99999974E-6 : f32
    %136 = vector.broadcast %cst_45 : f32 to vector<16x1xf32>
    %137 = arith.addf %133, %136 : vector<16x1xf32>
    %138 = math.rsqrt %137 : vector<16x1xf32>
    %139 = vector.broadcast %138 : vector<16x1xf32> to vector<16x128xf32>
    %140 = arith.mulf %135, %139 : vector<16x128xf32>
    %c0_46 = arith.constant 0 : index
    %c0_47 = arith.constant 0 : index
    %141 = vector.load %arg11[%c0_46, %c0_47] : memref<1x128xf32, #tpu.memory_space<vmem>>, vector<1x128xf32>
    %142 = vector.broadcast %141 : vector<1x128xf32> to vector<16x128xf32>
    %143 = arith.mulf %140, %142 : vector<16x128xf32>
    %c0_48 = arith.constant 0 : index
    %c0_49 = arith.constant 0 : index
    %144 = vector.load %arg12[%c0_48, %c0_49] : memref<1x128xf32, #tpu.memory_space<vmem>>, vector<1x128xf32>
    %145 = vector.broadcast %144 : vector<1x128xf32> to vector<16x128xf32>
    %146 = arith.addf %143, %145 : vector<16x128xf32>
    %c0_50 = arith.constant 0 : index
    %c0_51 = arith.constant 0 : index
    %c0_52 = arith.constant 0 : index
    %147 = vector.load %arg13[%c0_50, %c0_51, %c0_52] : memref<1x16x128xf32, #tpu.memory_space<vmem>>, vector<1x16x128xf32>
    %148 = vector.shape_cast %147 : vector<1x16x128xf32> to vector<16x128xf32>
    %149 = vector.shape_cast %146 : vector<16x128xf32> to vector<1x16x128xf32>
    tpu.vector_store %arg13[%c0_50, %c0_51, %c0_52], %149 {strides = array<i32>} : memref<1x16x128xf32, #tpu.memory_space<vmem>>, vector<1x16x128xf32>,
    %cst_53 = arith.constant 2.500000e-01 : f32
    %150 = vector.broadcast %cst_53 : f32 to vector<16x128xf32>
    %151 = arith.mulf %101, %150 : vector<16x128xf32>
    %c0_54 = arith.constant 0 : index
    %c0_55 = arith.constant 0 : index
    %c0_56 = arith.constant 0 : index
    %152 = vector.load %arg14[%c0_54, %c0_55, %c0_56] : memref<1x16x128xf32, #tpu.memory_space<vmem>>, vector<1x16x128xf32>
    %153 = vector.shape_cast %152 : vector<1x16x128xf32> to vector<16x128xf32>
    %154 = vector.shape_cast %151 : vector<16x128xf32> to vector<1x16x128xf32>
    tpu.vector_store %arg14[%c0_54, %c0_55, %c0_56], %154 {strides = array<i32>} : memref<1x16x128xf32, #tpu.memory_space<vmem>>, vector<1x16x128xf32>,
    return
  }
  func.func @transform_0(%arg0: i32, %arg1: i32) -> (i32, i32, i32) {
    %c0_i32 = arith.constant 0 : i32
    %c0_i32_0 = arith.constant 0 : i32
    return %arg0, %arg1, %c0_i32 : i32, i32, i32
  }
  func.func @transform_1(%arg0: i32, %arg1: i32) -> (i32, i32, i32) {
    %c0_i32 = arith.constant 0 : i32
    %c0_i32_0 = arith.constant 0 : i32
    %c0_i32_1 = arith.constant 0 : i32
    return %arg0, %c0_i32, %c0_i32_0 : i32, i32, i32
  }
  func.func @transform_2(%arg0: i32, %arg1: i32) -> (i32, i32, i32) {
    %c0_i32 = arith.constant 0 : i32
    %c0_i32_0 = arith.constant 0 : i32
    %c0_i32_1 = arith.constant 0 : i32
    return %arg0, %c0_i32, %c0_i32_0 : i32, i32, i32
  }
  func.func @transform_3(%arg0: i32, %arg1: i32) -> (i32, i32) {
    %c0_i32 = arith.constant 0 : i32
    %c0_i32_0 = arith.constant 0 : i32
    %c0_i32_1 = arith.constant 0 : i32
    return %c0_i32, %c0_i32_0 : i32, i32
  }
  func.func @transform_4(%arg0: i32, %arg1: i32) -> (i32, i32) {
    %c0_i32 = arith.constant 0 : i32
    %c0_i32_0 = arith.constant 0 : i32
    %c0_i32_1 = arith.constant 0 : i32
    return %c0_i32, %c0_i32_0 : i32, i32
  }
  func.func @transform_5(%arg0: i32, %arg1: i32) -> (i32, i32) {
    %c0_i32 = arith.constant 0 : i32
    %c0_i32_0 = arith.constant 0 : i32
    %c0_i32_1 = arith.constant 0 : i32
    return %c0_i32, %c0_i32_0 : i32, i32
  }
  func.func @transform_6(%arg0: i32, %arg1: i32) -> (i32, i32) {
    %c0_i32 = arith.constant 0 : i32
    %c0_i32_0 = arith.constant 0 : i32
    %c0_i32_1 = arith.constant 0 : i32
    return %c0_i32, %c0_i32_0 : i32, i32
  }
  func.func @transform_7(%arg0: i32, %arg1: i32) -> (i32, i32) {
    %c0_i32 = arith.constant 0 : i32
    %c0_i32_0 = arith.constant 0 : i32
    %c0_i32_1 = arith.constant 0 : i32
    return %c0_i32, %c0_i32_0 : i32, i32
  }
  func.func @transform_8(%arg0: i32, %arg1: i32) -> (i32, i32) {
    %c0_i32 = arith.constant 0 : i32
    %c0_i32_0 = arith.constant 0 : i32
    %c0_i32_1 = arith.constant 0 : i32
    return %c0_i32, %c0_i32_0 : i32, i32
  }
  func.func @transform_9(%arg0: i32, %arg1: i32) -> (i32, i32) {
    %c0_i32 = arith.constant 0 : i32
    %c0_i32_0 = arith.constant 0 : i32
    %c0_i32_1 = arith.constant 0 : i32
    return %c0_i32, %c0_i32_0 : i32, i32
  }
  func.func @transform_10(%arg0: i32, %arg1: i32) -> (i32, i32) {
    %c0_i32 = arith.constant 0 : i32
    %c0_i32_0 = arith.constant 0 : i32
    %c0_i32_1 = arith.constant 0 : i32
    return %c0_i32, %c0_i32_0 : i32, i32
  }
  func.func @transform_11(%arg0: i32, %arg1: i32) -> (i32, i32, i32) {
    %c0_i32 = arith.constant 0 : i32
    %c0_i32_0 = arith.constant 0 : i32
    return %arg0, %arg1, %c0_i32 : i32, i32, i32
  }
  func.func @transform_12(%arg0: i32, %arg1: i32) -> (i32, i32, i32) {
    %c0_i32 = arith.constant 0 : i32
    %c0_i32_0 = arith.constant 0 : i32
    return %arg0, %arg1, %c0_i32 : i32, i32, i32
  }
}

</mosaic_0001>

<llo_original>
// kernel: tpu_custom_call.1
$region0: #{tpu_custom_call.1}
  #allocation0 [shape = 'u32[]', space=smem, size = 0x4, offset = 0x4, fixed_abs, tag = 'smem constant byte address 0x4 - core index']
  #allocation1 [shape = 'u32[144,128]{1,0:T(1,128)}', space=vmem, size = 0x12000, scoped, tag = 'internal scratch']
  %s0 = inlined_call_operand.vmem [shape: f32[2,16,128], index: 0, kind: input, shape index: {}]
  %s1 = inlined_call_operand.vmem [shape: bf16[2,128,32], index: 1, kind: input, shape index: {}]
  %s2 = inlined_call_operand.vmem [shape: f32[2,1,128], index: 2, kind: input, shape index: {}]
  %s3 = inlined_call_operand.vmem [shape: bf16[128,32], index: 3, kind: input, shape index: {}]
  %s4 = inlined_call_operand.vmem [shape: f32[1,32], index: 4, kind: input, shape index: {}]
  %s5 = inlined_call_operand.vmem [shape: bf16[32,64], index: 5, kind: input, shape index: {}]
  %s6 = inlined_call_operand.vmem [shape: f32[1,64], index: 6, kind: input, shape index: {}]
  %s7 = inlined_call_operand.vmem [shape: bf16[32,128], index: 7, kind: input, shape index: {}]
  %s8 = inlined_call_operand.vmem [shape: f32[1,128], index: 8, kind: input, shape index: {}]
  %s9 = inlined_call_operand.vmem [shape: f32[1,128], index: 9, kind: input, shape index: {}]
  %s10 = inlined_call_operand.vmem [shape: f32[1,128], index: 10, kind: input, shape index: {}]
  %s11 = inlined_call_operand.hbm [shape: f32[2,16,128], index: 11, kind: output, shape index: {0}]
  %s12 = inlined_call_operand.hbm [shape: f32[2,16,128], index: 12, kind: output, shape index: {1}]
  %13 = xla_tuple %s11, %s12
  %s14 = sld [smem:[#allocation0]]
  $region85: #{tpu_custom_call.1} parent=0
    _
  %s16 = ssub.s32 1, %s14
  %s17 = scalar_select 0, %s16, %s14
  $region1: #{tpu_custom_call.1} parent=0
    #allocation2 [shape = 'u8[16384]{0}', space=vmem, size = 0x4000, scoped, tag = 'output window, operand 0']
    #allocation3 [shape = 's32[2]{0}', space=sflag, size = 0x8, scoped, tag = 'scoped memory for tpu_custom_call.1']
    #allocation4 [shape = 'u8[16384]{0}', space=vmem, size = 0x4000, scoped, tag = 'output window, operand 1']
    #allocation5 [shape = 's32[2]{0}', space=sflag, size = 0x8, scoped, tag = 'scoped memory for tpu_custom_call.1']
    %18 = vsyncpa [#allocation3], 0
    %s19 = scalar_lea.sflag [#allocation3], 1
    %20 = vsyncpa %s19, 0
    %21 = vsyncpa [#allocation5], 0
    %s22 = scalar_lea.sflag [#allocation5], 1
    %23 = vsyncpa %s22, 0
    loop: start=0, step=1, limit=4
    $region2: #{tpu_custom_call.1} parent=1 // loop_pre_header
      _
    $region3: #{tpu_custom_call.1} parent=1 // loop_header
      %s25 = sphi 0, %s29
      %p26 = scmp.ge.s32.totalorder %s25, 4
      %s32 = sphi 0, %s44
      %s33 = sphi 0, %s40
      %s34 = sphi 0, %s32
      %s35 = sphi 0, %s33
      %s36 = sphi 0, %s34
      %s37 = sphi 0, %s35
      %s49 = sphi 0, %s51
      %s52 = sphi 0, %s49
      %s53 = sphi 0, %s52
      %s69 = sphi 0, %s53
      %s75 = sphi 0, %s77
      %s78 = sphi 0, %s75
      %s79 = sphi 0, %s78
      %s95 = sphi 0, %s79
      %s101 = sphi 0, %s103
      %s104 = sphi 0, %s101
      %s105 = sphi 0, %s104
      %s121 = sphi 0, %s105
      %s125 = sphi 0, %s125
      %s127 = sphi 0, %s125
      %s128 = sphi 0, %s127
      %s142 = sphi 0, %s128
      %s146 = sphi 0, %s146
      %s148 = sphi 0, %s146
      %s149 = sphi 0, %s148
      %s163 = sphi 0, %s149
      %s167 = sphi 0, %s167
      %s169 = sphi 0, %s167
      %s170 = sphi 0, %s169
      %s184 = sphi 0, %s170
      %s188 = sphi 0, %s188
      %s190 = sphi 0, %s188
      %s191 = sphi 0, %s190
      %s205 = sphi 0, %s191
      %s209 = sphi 0, %s209
      %s211 = sphi 0, %s209
      %s212 = sphi 0, %s211
      %s226 = sphi 0, %s212
      %s230 = sphi 0, %s230
      %s232 = sphi 0, %s230
      %s233 = sphi 0, %s232
      %s247 = sphi 0, %s233
      %s251 = sphi 0, %s251
      %s253 = sphi 0, %s251
      %s254 = sphi 0, %s253
      %s268 = sphi 0, %s254
      %s272 = sphi 0, %s272
      %s274 = sphi 0, %s272
      %s275 = sphi 0, %s274
      %s289 = sphi 0, %s275
      %s297 = sphi 0, %s299
      %s300 = sphi 0, %s297
      %s301 = sphi 0, %s300
      %s317 = sphi 0, %s301
      %s325 = sphi 0, %s327
      %s328 = sphi 0, %s325
      %s329 = sphi 0, %s328
      %s345 = sphi 0, %s329
    $region4: #{tpu_custom_call.1} parent=1 // loop_header_branch
      %28 = sbr.rel (%p26) target = $region8
    $region5: #{tpu_custom_call.1} parent=1 // loop_body
      %s30 = ssub.s32 %s25, 1
      %s31 = ssub.s32 %s25, 2
      %s38 = sadd.s32 1, %s33
      %p39 = scmp.ge.s32.totalorder %s38, 1
      %s40 = scalar_select %p39, 0, %s38
      %s41 = sadd.s32 1, %s32
      %s42 = scalar_select %p39, %s41, %s32
      %p43 = scmp.ge.s32.totalorder %s42, 2
      %s44 = scalar_select %p43, 0, %s42
      %s45 = ssub.s32 %s32, %s44
      %s46 = ssub.s32 %s33, %s40
      %s47 = sor.u32 %s45, %s46
      %p48 = scmp.eq.s32.totalorder %s47, 0
      %s50 = sadd.s32 %s49, 1
      %s51 = scalar_select %p48, %s49, %s50
      %p54 = pneg %p48
      %p55 = scmp.eq.s32.totalorder %s25, 1
      %p56 = por %p54, %p55
      %p57 = scmp.ne.s32.totalorder %s49, %s52
      %p58 = scmp.eq.s32.totalorder %s25, 0
      %p59 = por %p57, %p58
      %p60 = scmp.ne.s32.totalorder %s49, %s52
      %p61 = scmp.eq.s32.totalorder %s30, 1
      %p62 = por %p60, %p61
      %p63 = scmp.ne.s32.totalorder %s52, %s53
      %p64 = scmp.eq.s32.totalorder %s30, 0
      %p65 = por %p63, %p64
      %p66 = scmp.ne.s32.totalorder %s52, %s53
      %p67 = scmp.eq.s32.totalorder %s31, 1
      %p68 = por %p66, %p67
      %p70 = scmp.ne.s32.totalorder %s53, %s69
      %p71 = scmp.eq.s32.totalorder %s31, 0
      %p72 = por %p70, %p71
      %s73 = ssub.s32 %s32, %s44
      %p74 = scmp.eq.s32.totalorder %s73, 0
      %s76 = sadd.s32 %s75, 1
      %s77 = scalar_select %p74, %s75, %s76
      %p80 = pneg %p74
      %p81 = scmp.eq.s32.totalorder %s25, 1
      %p82 = por %p80, %p81
      %p83 = scmp.ne.s32.totalorder %s75, %s78
      %p84 = scmp.eq.s32.totalorder %s25, 0
      %p85 = por %p83, %p84
      %p86 = scmp.ne.s32.totalorder %s75, %s78
      %p87 = scmp.eq.s32.totalorder %s30, 1
      %p88 = por %p86, %p87
      %p89 = scmp.ne.s32.totalorder %s78, %s79
      %p90 = scmp.eq.s32.totalorder %s30, 0
      %p91 = por %p89, %p90
      %p92 = scmp.ne.s32.totalorder %s78, %s79
      %p93 = scmp.eq.s32.totalorder %s31, 1
      %p94 = por %p92, %p93
      %p96 = scmp.ne.s32.totalorder %s79, %s95
      %p97 = scmp.eq.s32.totalorder %s31, 0
      %p98 = por %p96, %p97
      %s99 = ssub.s32 %s32, %s44
      %p100 = scmp.eq.s32.totalorder %s99, 0
      %s102 = sadd.s32 %s101, 1
      %s103 = scalar_select %p100, %s101, %s102
      %p106 = pneg %p100
      %p107 = scmp.eq.s32.totalorder %s25, 1
      %p108 = por %p106, %p107
      %p109 = scmp.ne.s32.totalorder %s101, %s104
      %p110 = scmp.eq.s32.totalorder %s25, 0
      %p111 = por %p109, %p110
      %p112 = scmp.ne.s32.totalorder %s101, %s104
      %p113 = scmp.eq.s32.totalorder %s30, 1
      %p114 = por %p112, %p113
      %p115 = scmp.ne.s32.totalorder %s104, %s105
      %p116 = scmp.eq.s32.totalorder %s30, 0
      %p117 = por %p115, %p116
      %p118 = scmp.ne.s32.totalorder %s104, %s105
      %p119 = scmp.eq.s32.totalorder %s31, 1
      %p120 = por %p118, %p119
      %p122 = scmp.ne.s32.totalorder %s105, %s121
      %p123 = scmp.eq.s32.totalorder %s31, 0
      %p124 = por %p122, %p123
      %s126 = sadd.s32 %s125, 1
      %p129 = scmp.eq.s32.totalorder %s25, 1
      %p130 = scmp.ne.s32.totalorder %s125, %s127
      %p131 = scmp.eq.s32.totalorder %s25, 0
      %p132 = por %p130, %p131
      %p133 = scmp.ne.s32.totalorder %s125, %s127
      %p134 = scmp.eq.s32.totalorder %s30, 1
      %p135 = por %p133, %p134
      %p136 = scmp.ne.s32.totalorder %s127, %s128
      %p137 = scmp.eq.s32.totalorder %s30, 0
      %p138 = por %p136, %p137
      %p139 = scmp.ne.s32.totalorder %s127, %s128
      %p140 = scmp.eq.s32.totalorder %s31, 1
      %p141 = por %p139, %p140
      %p143 = scmp.ne.s32.totalorder %s128, %s142
      %p144 = scmp.eq.s32.totalorder %s31, 0
      %p145 = por %p143, %p144
      %s147 = sadd.s32 %s146, 1
      %p150 = scmp.eq.s32.totalorder %s25, 1
      %p151 = scmp.ne.s32.totalorder %s146, %s148
      %p152 = scmp.eq.s32.totalorder %s25, 0
      %p153 = por %p151, %p152
      %p154 = scmp.ne.s32.totalorder %s146, %s148
      %p155 = scmp.eq.s32.totalorder %s30, 1
      %p156 = por %p154, %p155
      %p157 = scmp.ne.s32.totalorder %s148, %s149
      %p158 = scmp.eq.s32.totalorder %s30, 0
      %p159 = por %p157, %p158
      %p160 = scmp.ne.s32.totalorder %s148, %s149
      %p161 = scmp.eq.s32.totalorder %s31, 1
      %p162 = por %p160, %p161
      %p164 = scmp.ne.s32.totalorder %s149, %s163
      %p165 = scmp.eq.s32.totalorder %s31, 0
      %p166 = por %p164, %p165
      %s168 = sadd.s32 %s167, 1
      %p171 = scmp.eq.s32.totalorder %s25, 1
      %p172 = scmp.ne.s32.totalorder %s167, %s169
      %p173 = scmp.eq.s32.totalorder %s25, 0
      %p174 = por %p172, %p173
      %p175 = scmp.ne.s32.totalorder %s167, %s169
      %p176 = scmp.eq.s32.totalorder %s30, 1
      %p177 = por %p175, %p176
      %p178 = scmp.ne.s32.totalorder %s169, %s170
      %p179 = scmp.eq.s32.totalorder %s30, 0
      %p180 = por %p178, %p179
      %p181 = scmp.ne.s32.totalorder %s169, %s170
      %p182 = scmp.eq.s32.totalorder %s31, 1
      %p183 = por %p181, %p182
      %p185 = scmp.ne.s32.totalorder %s170, %s184
      %p186 = scmp.eq.s32.totalorder %s31, 0
      %p187 = por %p185, %p186
      %s189 = sadd.s32 %s188, 1
      %p192 = scmp.eq.s32.totalorder %s25, 1
      %p193 = scmp.ne.s32.totalorder %s188, %s190
      %p194 = scmp.eq.s32.totalorder %s25, 0
      %p195 = por %p193, %p194
      %p196 = scmp.ne.s32.totalorder %s188, %s190
      %p197 = scmp.eq.s32.totalorder %s30, 1
      %p198 = por %p196, %p197
      %p199 = scmp.ne.s32.totalorder %s190, %s191
      %p200 = scmp.eq.s32.totalorder %s30, 0
      %p201 = por %p199, %p200
      %p202 = scmp.ne.s32.totalorder %s190, %s191
      %p203 = scmp.eq.s32.totalorder %s31, 1
      %p204 = por %p202, %p203
      %p206 = scmp.ne.s32.totalorder %s191, %s205
      %p207 = scmp.eq.s32.totalorder %s31, 0
      %p208 = por %p206, %p207
      %s210 = sadd.s32 %s209, 1
      %p213 = scmp.eq.s32.totalorder %s25, 1
      %p214 = scmp.ne.s32.totalorder %s209, %s211
      %p215 = scmp.eq.s32.totalorder %s25, 0
      %p216 = por %p214, %p215
      %p217 = scmp.ne.s32.totalorder %s209, %s211
      %p218 = scmp.eq.s32.totalorder %s30, 1
      %p219 = por %p217, %p218
      %p220 = scmp.ne.s32.totalorder %s211, %s212
      %p221 = scmp.eq.s32.totalorder %s30, 0
      %p222 = por %p220, %p221
      %p223 = scmp.ne.s32.totalorder %s211, %s212
      %p224 = scmp.eq.s32.totalorder %s31, 1
      %p225 = por %p223, %p224
      %p227 = scmp.ne.s32.totalorder %s212, %s226
      %p228 = scmp.eq.s32.totalorder %s31, 0
      %p229 = por %p227, %p228
      %s231 = sadd.s32 %s230, 1
      %p234 = scmp.eq.s32.totalorder %s25, 1
      %p235 = scmp.ne.s32.totalorder %s230, %s232
      %p236 = scmp.eq.s32.totalorder %s25, 0
      %p237 = por %p235, %p236
      %p238 = scmp.ne.s32.totalorder %s230, %s232
      %p239 = scmp.eq.s32.totalorder %s30, 1
      %p240 = por %p238, %p239
      %p241 = scmp.ne.s32.totalorder %s232, %s233
      %p242 = scmp.eq.s32.totalorder %s30, 0
      %p243 = por %p241, %p242
      %p244 = scmp.ne.s32.totalorder %s232, %s233
      %p245 = scmp.eq.s32.totalorder %s31, 1
      %p246 = por %p244, %p245
      %p248 = scmp.ne.s32.totalorder %s233, %s247
      %p249 = scmp.eq.s32.totalorder %s31, 0
      %p250 = por %p248, %p249
      %s252 = sadd.s32 %s251, 1
      %p255 = scmp.eq.s32.totalorder %s25, 1
      %p256 = scmp.ne.s32.totalorder %s251, %s253
      %p257 = scmp.eq.s32.totalorder %s25, 0
      %p258 = por %p256, %p257
      %p259 = scmp.ne.s32.totalorder %s251, %s253
      %p260 = scmp.eq.s32.totalorder %s30, 1
      %p261 = por %p259, %p260
      %p262 = scmp.ne.s32.totalorder %s253, %s254
      %p263 = scmp.eq.s32.totalorder %s30, 0
      %p264 = por %p262, %p263
      %p265 = scmp.ne.s32.totalorder %s253, %s254
      %p266 = scmp.eq.s32.totalorder %s31, 1
      %p267 = por %p265, %p266
      %p269 = scmp.ne.s32.totalorder %s254, %s268
      %p270 = scmp.eq.s32.totalorder %s31, 0
      %p271 = por %p269, %p270
      %s273 = sadd.s32 %s272, 1
      %p276 = scmp.eq.s32.totalorder %s25, 1
      %p277 = scmp.ne.s32.totalorder %s272, %s274
      %p278 = scmp.eq.s32.totalorder %s25, 0
      %p279 = por %p277, %p278
      %p280 = scmp.ne.s32.totalorder %s272, %s274
      %p281 = scmp.eq.s32.totalorder %s30, 1
      %p282 = por %p280, %p281
      %p283 = scmp.ne.s32.totalorder %s274, %s275
      %p284 = scmp.eq.s32.totalorder %s30, 0
      %p285 = por %p283, %p284
      %p286 = scmp.ne.s32.totalorder %s274, %s275
      %p287 = scmp.eq.s32.totalorder %s31, 1
      %p288 = por %p286, %p287
      %p290 = scmp.ne.s32.totalorder %s275, %s289
      %p291 = scmp.eq.s32.totalorder %s31, 0
      %p292 = por %p290, %p291
      %s293 = ssub.s32 %s32, %s44
      %s294 = ssub.s32 %s33, %s40
      %s295 = sor.u32 %s293, %s294
      %p296 = scmp.eq.s32.totalorder %s295, 0
      %s298 = sadd.s32 %s297, 1
      %s299 = scalar_select %p296, %s297, %s298
      %p302 = pneg %p296
      %p303 = scmp.eq.s32.totalorder %s25, 1
      %p304 = por %p302, %p303
      %p305 = scmp.ne.s32.totalorder %s297, %s300
      %p306 = scmp.eq.s32.totalorder %s25, 0
      %p307 = por %p305, %p306
      %p308 = scmp.ne.s32.totalorder %s297, %s300
      %p309 = scmp.eq.s32.totalorder %s30, 1
      %p310 = por %p308, %p309
      %p311 = scmp.ne.s32.totalorder %s300, %s301
      %p312 = scmp.eq.s32.totalorder %s30, 0
      %p313 = por %p311, %p312
      %p314 = scmp.ne.s32.totalorder %s300, %s301
      %p315 = scmp.eq.s32.totalorder %s31, 1
      %p316 = por %p314, %p315
      %p318 = scmp.ne.s32.totalorder %s301, %s317
      %p319 = scmp.eq.s32.totalorder %s31, 0
      %p320 = por %p318, %p319
      %s321 = ssub.s32 %s32, %s44
      %s322 = ssub.s32 %s33, %s40
      %s323 = sor.u32 %s321, %s322
      %p324 = scmp.eq.s32.totalorder %s323, 0
      %s326 = sadd.s32 %s325, 1
      %s327 = scalar_select %p324, %s325, %s326
      %p330 = pneg %p324
      %p331 = scmp.eq.s32.totalorder %s25, 1
      %p332 = por %p330, %p331
      %p333 = scmp.ne.s32.totalorder %s325, %s328
      %p334 = scmp.eq.s32.totalorder %s25, 0
      %p335 = por %p333, %p334
      %p336 = scmp.ne.s32.totalorder %s325, %s328
      %p337 = scmp.eq.s32.totalorder %s30, 1
      %p338 = por %p336, %p337
      %p339 = scmp.ne.s32.totalorder %s328, %s329
      %p340 = scmp.eq.s32.totalorder %s30, 0
      %p341 = por %p339, %p340
      %p342 = scmp.ne.s32.totalorder %s328, %s329
      %p343 = scmp.eq.s32.totalorder %s31, 1
      %p344 = por %p342, %p343
      %p346 = scmp.ne.s32.totalorder %s329, %s345
      %p347 = scmp.eq.s32.totalorder %s31, 0
      %p348 = por %p346, %p347
      %p349 = scmp.le.s32.totalorder 1, %s25
      %p350 = scmp.lt.s32.totalorder %s25, 3
      %p351 = pnand %p349, %p350
      %p352 = pneg %p351
      // Predicated region
      $region9: #{tpu_custom_call.1} parent=5 // pred_check
        _
      $region10: #{tpu_custom_call.1} parent=5 // pred_check_branch
        %354 = sbr.rel (%p351) target = $region12
      $region11: #{tpu_custom_call.1} parent=5 // pred_region
        %s355 = ssub.s32 %s25, 1
        // Predicated region
        $region13: #{tpu_custom_call.1} parent=11 // pred_check
          %p356 = pneg %p138
        $region14: #{tpu_custom_call.1} parent=11 // pred_check_branch
          %358 = sbr.rel (%p356) target = $region16
        $region15: #{tpu_custom_call.1} parent=11 // pred_region
          _
        $region16: #{tpu_custom_call.1} parent=11 // pred_fallthru
          _
        // Predicated region
        $region17: #{tpu_custom_call.1} parent=11 // pred_check
          %p359 = pneg %p159
        $region18: #{tpu_custom_call.1} parent=11 // pred_check_branch
          %361 = sbr.rel (%p359) target = $region20
        $region19: #{tpu_custom_call.1} parent=11 // pred_region
          _
        $region20: #{tpu_custom_call.1} parent=11 // pred_fallthru
          _
        // Predicated region
        $region21: #{tpu_custom_call.1} parent=11 // pred_check
          %p362 = pneg %p180
        $region22: #{tpu_custom_call.1} parent=11 // pred_check_branch
          %364 = sbr.rel (%p362) target = $region24
        $region23: #{tpu_custom_call.1} parent=11 // pred_region
          _
        $region24: #{tpu_custom_call.1} parent=11 // pred_fallthru
          _
        // Predicated region
        $region25: #{tpu_custom_call.1} parent=11 // pred_check
          %p365 = pneg %p201
        $region26: #{tpu_custom_call.1} parent=11 // pred_check_branch
          %367 = sbr.rel (%p365) target = $region28
        $region27: #{tpu_custom_call.1} parent=11 // pred_region
          _
        $region28: #{tpu_custom_call.1} parent=11 // pred_fallthru
          _
        // Predicated region
        $region29: #{tpu_custom_call.1} parent=11 // pred_check
          %p368 = pneg %p222
        $region30: #{tpu_custom_call.1} parent=11 // pred_check_branch
          %370 = sbr.rel (%p368) target = $region32
        $region31: #{tpu_custom_call.1} parent=11 // pred_region
          _
        $region32: #{tpu_custom_call.1} parent=11 // pred_fallthru
          _
        // Predicated region
        $region33: #{tpu_custom_call.1} parent=11 // pred_check
          %p371 = pneg %p243
        $region34: #{tpu_custom_call.1} parent=11 // pred_check_branch
          %373 = sbr.rel (%p371) target = $region36
        $region35: #{tpu_custom_call.1} parent=11 // pred_region
          _
        $region36: #{tpu_custom_call.1} parent=11 // pred_fallthru
          _
        // Predicated region
        $region37: #{tpu_custom_call.1} parent=11 // pred_check
          %p374 = pneg %p264
        $region38: #{tpu_custom_call.1} parent=11 // pred_check_branch
          %376 = sbr.rel (%p374) target = $region40
        $region39: #{tpu_custom_call.1} parent=11 // pred_region
          _
        $region40: #{tpu_custom_call.1} parent=11 // pred_fallthru
          _
        // Predicated region
        $region41: #{tpu_custom_call.1} parent=11 // pred_check
          %p377 = pneg %p285
        $region42: #{tpu_custom_call.1} parent=11 // pred_check_branch
          %379 = sbr.rel (%p377) target = $region44
        $region43: #{tpu_custom_call.1} parent=11 // pred_region
          _
        $region44: #{tpu_custom_call.1} parent=11 // pred_fallthru
          _
      $region12: #{tpu_custom_call.1} parent=5 // pred_fallthru
        _
      %p380 = scmp.lt.s32.totalorder %s25, 2
      // Predicated region
      $region45: #{tpu_custom_call.1} parent=5 // pred_check
        %p381 = pneg %p380
      $region46: #{tpu_custom_call.1} parent=5 // pred_check_branch
        %383 = sbr.rel (%p381) target = $region48
      $region47: #{tpu_custom_call.1} parent=5 // pred_region
        // Predicated region
        $region49: #{tpu_custom_call.1} parent=47 // pred_check
          %p384 = pneg %p59
        $region50: #{tpu_custom_call.1} parent=47 // pred_check_branch
          %386 = sbr.rel (%p384) target = $region52
        $region51: #{tpu_custom_call.1} parent=47 // pred_region
          %s387 = smul.u32 2, %s33
          %p388 = scmp.lt.s32.totalorder %s32, 1
          %s389 = scalar_select %p388, %s32, 1
          %p390 = scmp.lt.s32.totalorder %s387, 1
          %s391 = scalar_select %p390, %s387, 1
          %s392 = smul.addr %s389, 2
          %s393 = sadd.s32 %s391, %s392
          %s394 = smul.addr %s393, 8
          %s395 = scalar_lea.vmem %s0, %s394
          %s396 = smul.u32 2, %s33
        $region52: #{tpu_custom_call.1} parent=47 // pred_fallthru
          _
        // Predicated region
        $region53: #{tpu_custom_call.1} parent=47 // pred_check
          %p397 = pneg %p85
        $region54: #{tpu_custom_call.1} parent=47 // pred_check_branch
          %399 = sbr.rel (%p397) target = $region56
        $region55: #{tpu_custom_call.1} parent=47 // pred_region
          %p400 = scmp.lt.s32.totalorder %s32, 1
          %s401 = scalar_select %p400, %s32, 1
          %s402 = smul.addr %s401, 16
          %s403 = smul.addr %s402, 4
          %s404 = scalar_lea.vmem %s1, %s403
        $region56: #{tpu_custom_call.1} parent=47 // pred_fallthru
          _
        // Predicated region
        $region57: #{tpu_custom_call.1} parent=47 // pred_check
          %p405 = pneg %p111
        $region58: #{tpu_custom_call.1} parent=47 // pred_check_branch
          %407 = sbr.rel (%p405) target = $region60
        $region59: #{tpu_custom_call.1} parent=47 // pred_region
          %p408 = scmp.lt.s32.totalorder %s32, 1
          %s409 = scalar_select %p408, %s32, 1
          %s410 = scalar_lea.vmem %s2, %s409
        $region60: #{tpu_custom_call.1} parent=47 // pred_fallthru
          _
      $region48: #{tpu_custom_call.1} parent=5 // pred_fallthru
        _
      %p411 = scmp.le.s32.totalorder 1, %s25
      %p412 = scmp.lt.s32.totalorder %s25, 3
      %p413 = pnand %p411, %p412
      %p414 = pneg %p413
      // Predicated region
      $region61: #{tpu_custom_call.1} parent=5 // pred_check
        _
      $region62: #{tpu_custom_call.1} parent=5 // pred_check_branch
        %416 = sbr.rel (%p413) target = $region64
      $region63: #{tpu_custom_call.1} parent=5 // pred_region
        %s417 = ssub.s32 %s25, 1
        %s418 = smul.u32 2, %s35
        %p419 = scmp.lt.s32.totalorder %s34, 1
        %s420 = scalar_select %p419, %s34, 1
        %p421 = scmp.lt.s32.totalorder %s418, 1
        %s422 = scalar_select %p421, %s418, 1
        %s423 = smul.addr %s420, 2
        %s424 = sadd.s32 %s422, %s423
        %s425 = smul.addr %s424, 8
        %s426 = scalar_lea.vmem %s0, %s425
        %p427 = pneg %p65
        %p428 = pneg %p62
        %p429 = scmp.lt.s32.totalorder %s34, 1
        %s430 = scalar_select %p429, %s34, 1
        %s431 = smul.addr %s430, 16
        %s432 = smul.addr %s431, 4
        %s433 = scalar_lea.vmem %s1, %s432
        %p434 = pneg %p91
        %p435 = pneg %p88
        %p436 = scmp.lt.s32.totalorder %s34, 1
        %s437 = scalar_select %p436, %s34, 1
        %s438 = scalar_lea.vmem %s2, %s437
        %p439 = pneg %p117
        %p440 = pneg %p114
        %p441 = pneg %p138
        %p442 = pneg %p135
        %p443 = pneg %p159
        %p444 = pneg %p156
        %p445 = pneg %p180
        %p446 = pneg %p177
        %p447 = pneg %p201
        %p448 = pneg %p198
        %p449 = pneg %p222
        %p450 = pneg %p219
        %p451 = pneg %p243
        %p452 = pneg %p240
        %p453 = pneg %p264
        %p454 = pneg %p261
        %p455 = pneg %p285
        %p456 = pneg %p282
        %p457 = pneg %p313
        %p458 = pneg %p310
        %s459 = sand.u32 %s300, 1
        %s460 = scalar_lea.sflag [#allocation3], %s459
        %s461 = sand.u32 %s300, 1
        %s462 = smul.addr %s461, 16
        %s463 = scalar_lea.vmem [#allocation2], %s462
        %p464 = pneg %p341
        %p465 = pneg %p338
        %s466 = sand.u32 %s328, 1
        %s467 = scalar_lea.sflag [#allocation5], %s466
        %s468 = sand.u32 %s328, 1
        %s469 = smul.addr %s468, 16
        %s470 = scalar_lea.vmem [#allocation4], %s469
        %s471 = smul.u32 2, %s35
        %p472 = scmp.lt.s32.totalorder %s34, 1
        %s473 = scalar_select %p472, %s34, 1
        %p474 = scmp.lt.s32.totalorder %s471, 1
        %s475 = scalar_select %p474, %s471, 1
        %s476 = smul.addr %s473, 2
        %s477 = sadd.s32 %s475, %s476
        %s478 = smul.addr %s477, 8
        %s479 = scalar_lea.vmem %s0, %s478
        %s480 = smul.u32 2, %s35
        %p481 = scmp.lt.s32.totalorder %s34, 1
        %s482 = scalar_select %p481, %s34, 1
        %s483 = smul.addr %s482, 16
        %s484 = smul.addr %s483, 4
        %s485 = scalar_lea.vmem %s1, %s484
        %p486 = scmp.lt.s32.totalorder %s34, 1
        %s487 = scalar_select %p486, %s34, 1
        %s488 = scalar_lea.vmem %s2, %s487
        %s489 = smul.u32 2, %s35
        %s490 = smul.u32 2, %s35
        %v492 = vld [vmem:[%s479] sm:$0xff]
        %v493 = vld [vmem:[%s479 + $0x8] sm:$0xff]
        %v494 = vld [vmem:[%s488] sm:$0x1]
        %v496 = vlaneseq
        %v497 = vshrl.u32 %v496, 7
        %v498 = vsub.s32 0, %v497
        %v499 = vrot.slane %v494, %v498
        %v501 = vpack.c.bf16 %v493, %v492
        %v502 = vld [vmem:[%s3] sm:$0xf]
        %v503 = vld [vmem:[%s3 + $0x4] sm:$0xf]
        %v504 = vld [vmem:[%s3 + $0x8] sm:$0xf]
        %v505 = vld [vmem:[%s3 + $0xc] sm:$0xf]
        %v506 = vld [vmem:[%s3 + $0x10] sm:$0xf]
        %v507 = vld [vmem:[%s3 + $0x14] sm:$0xf]
        %v508 = vld [vmem:[%s3 + $0x18] sm:$0xf]
        %v509 = vld [vmem:[%s3 + $0x1c] sm:$0xf]
        %v510 = vld [vmem:[%s3 + $0x20] sm:$0xf]
        %v511 = vld [vmem:[%s3 + $0x24] sm:$0xf]
        %v512 = vld [vmem:[%s3 + $0x28] sm:$0xf]
        %v513 = vld [vmem:[%s3 + $0x2c] sm:$0xf]
        %v514 = vld [vmem:[%s3 + $0x30] sm:$0xf]
        %v515 = vld [vmem:[%s3 + $0x34] sm:$0xf]
        %v516 = vld [vmem:[%s3 + $0x38] sm:$0xf]
        %v517 = vld [vmem:[%s3 + $0x3c] sm:$0xf]
        %v518 = vld [vmem:[%s4] sm:$0x1]
        %v520 = vlaneseq
        %v521 = vshrl.u32 %v520, 7
        %v522 = vsub.s32 0, %v521
        %v523 = vrot.slane %v518, %v522
        %v541 = vunpack.c.l.b16 %v502
        %v542 = vunpack.c.l.b16 %v503
        %v543 = vunpack.c.l.b16 %v504
        %v544 = vunpack.c.l.b16 %v505
        %v545 = vunpack.c.l.b16 %v506
        %v546 = vunpack.c.l.b16 %v507
        %v547 = vunpack.c.l.b16 %v508
        %v548 = vunpack.c.l.b16 %v509
        %v549 = vunpack.c.l.b16 %v510
        %v550 = vunpack.c.l.b16 %v511
        %v551 = vunpack.c.l.b16 %v512
        %v552 = vunpack.c.l.b16 %v513
        %v553 = vunpack.c.l.b16 %v514
        %v554 = vunpack.c.l.b16 %v515
        %v555 = vunpack.c.l.b16 %v516
        %v556 = vunpack.c.l.b16 %v517
        %v557 = vpack.c.b16 %v542, %v541
        %v558 = vpack.c.b16 %v544, %v543
        %v559 = vpack.c.b16 %v546, %v545
        %v560 = vpack.c.b16 %v548, %v547
        %v561 = vpack.c.b16 %v550, %v549
        %v562 = vpack.c.b16 %v552, %v551
        %v563 = vpack.c.b16 %v554, %v553
        %v564 = vpack.c.b16 %v556, %v555
        %573 = vmatprep.subr.bf16.mxu0 0
        %574 = vmatpush1.bf16.msra.mxu0 %v564
        %575 = vmatprep.subr.bf16.mxu0 0
        %576 = vmatpush1.bf16.msra.mxu0 %v563
        %577 = vmatprep.subr.bf16.mxu0 0
        %578 = vmatpush1.bf16.msra.mxu0 %v562
        %579 = vmatprep.subr.bf16.mxu0 0
        %580 = vmatpush1.bf16.msra.mxu0 %v561
        %581 = vmatprep.subr.bf16.mxu0 0
        %582 = vmatpush1.bf16.msra.mxu0 %v560
        %583 = vmatprep.subr.bf16.mxu0 0
        %584 = vmatpush1.bf16.msra.mxu0 %v559
        %585 = vmatprep.subr.bf16.mxu0 0
        %586 = vmatpush1.bf16.msra.mxu0 %v558
        %587 = vmatprep.subr.bf16.mxu0 0
        %588 = vmatpush1.bf16.msra.mxu0 %v557
        %589 = vmatprep.subr.bf16.mxu0 0
        %590 = vmatpush2.bf16.msra.mxu0 0
        %591 = vmatprep.subr.bf16.mxu0 0
        %592 = vmatpush2.bf16.msra.mxu0 0
        %593 = vmatprep.subr.bf16.mxu0 0
        %594 = vmatpush2.bf16.msra.mxu0 0
        %595 = vmatprep.subr.bf16.mxu0 0
        %596 = vmatpush2.bf16.msra.mxu0 0
        %597 = vmatprep.subr.bf16.mxu0 0
        %598 = vmatpush2.bf16.msra.mxu0 0
        %599 = vmatprep.subr.bf16.mxu0 0
        %600 = vmatpush2.bf16.msra.mxu0 0
        %601 = vmatprep.subr.bf16.mxu0 0
        %602 = vmatpush2.bf16.msra.mxu0 0
        %603 = vmatprep.subr.bf16.mxu0 0
        %604 = vmatpush2.bf16.msra.mxu0 0
        %605 = vmatprep.mubr.bf16.mxu0 0
        %606 = vmatmul.mubr.bf16.gmra.mxu0 %v501
        %v607 = vpop.f32.mrf.mxu0
        %v608 = vadd.f32 %v523, %v607
        %v609 = vpop.f32.mrf.mxu0
        %v610 = vpop.f32.mrf.mxu0
        %v611 = vadd.f32 %v523, %v610
        %v612 = vpop.f32.mrf.mxu0
        %613 = vdwg.mxu0
        %v614 = vld [vmem:[%s485] sm:$0xf]
        %v615 = vld [vmem:[%s485 + $0x4] sm:$0xf]
        %v616 = vld [vmem:[%s485 + $0x8] sm:$0xf]
        %v617 = vld [vmem:[%s485 + $0xc] sm:$0xf]
        %v618 = vld [vmem:[%s485 + $0x10] sm:$0xf]
        %v619 = vld [vmem:[%s485 + $0x14] sm:$0xf]
        %v620 = vld [vmem:[%s485 + $0x18] sm:$0xf]
        %v621 = vld [vmem:[%s485 + $0x1c] sm:$0xf]
        %v622 = vld [vmem:[%s485 + $0x20] sm:$0xf]
        %v623 = vld [vmem:[%s485 + $0x24] sm:$0xf]
        %v624 = vld [vmem:[%s485 + $0x28] sm:$0xf]
        %v625 = vld [vmem:[%s485 + $0x2c] sm:$0xf]
        %v626 = vld [vmem:[%s485 + $0x30] sm:$0xf]
        %v627 = vld [vmem:[%s485 + $0x34] sm:$0xf]
        %v628 = vld [vmem:[%s485 + $0x38] sm:$0xf]
        %v629 = vld [vmem:[%s485 + $0x3c] sm:$0xf]
        %v630 = vld [vmem:[%s5] sm:$0xf]
        %v631 = vld [vmem:[%s5 + $0x4] sm:$0xf]
        %v632 = vld [vmem:[%s5 + $0x8] sm:$0xf]
        %v633 = vld [vmem:[%s5 + $0xc] sm:$0xf]
        %v634 = vld [vmem:[%s6] sm:$0x1]
        %v636 = vlaneseq
        %v637 = vshrl.u32 %v636, 7
        %v638 = vsub.s32 0, %v637
        %v639 = vrot.slane %v634, %v638
        %v657 = vunpack.c.l.b16 %v614
        %v658 = vunpack.c.l.b16 %v615
        %v659 = vunpack.c.l.b16 %v616
        %v660 = vunpack.c.l.b16 %v617
        %v661 = vunpack.c.l.b16 %v618
        %v662 = vunpack.c.l.b16 %v619
        %v663 = vunpack.c.l.b16 %v620
        %v664 = vunpack.c.l.b16 %v621
        %v665 = vunpack.c.l.b16 %v622
        %v666 = vunpack.c.l.b16 %v623
        %v667 = vunpack.c.l.b16 %v624
        %v668 = vunpack.c.l.b16 %v625
        %v669 = vunpack.c.l.b16 %v626
        %v670 = vunpack.c.l.b16 %v627
        %v671 = vunpack.c.l.b16 %v628
        %v672 = vunpack.c.l.b16 %v629
        %v673 = vpack.c.b16 %v658, %v657
        %v674 = vpack.c.b16 %v660, %v659
        %v675 = vpack.c.b16 %v662, %v661
        %v676 = vpack.c.b16 %v664, %v663
        %v677 = vpack.c.b16 %v666, %v665
        %v678 = vpack.c.b16 %v668, %v667
        %v679 = vpack.c.b16 %v670, %v669
        %v680 = vpack.c.b16 %v672, %v671
        %v685 = vunpack.c.l.b16 %v630
        %v686 = vunpack.c.l.b16 %v631
        %v687 = vunpack.c.l.b16 %v632
        %v688 = vunpack.c.l.b16 %v633
        %v689 = vpack.c.b16 %v686, %v685
        %v690 = vpack.c.b16 %v688, %v687
        %vm693 = vcmask 261120
        %v695 = vsel %vm693, %v673, 0
        %v698 = vsel %vm693, %v674, 0
        %v701 = vsel %vm693, %v675, 0
        %v704 = vsel %vm693, %v676, 0
        %v707 = vsel %vm693, %v677, 0
        %v710 = vsel %vm693, %v678, 0
        %v713 = vsel %vm693, %v679, 0
        %v716 = vsel %vm693, %v680, 0
        %718 = vmatprep.subr.bf16.mxu0 0
        %719 = vmatpush1.bf16.msra.mxu0 0
        %720 = vmatprep.subr.bf16.mxu0 0
        %721 = vmatpush1.bf16.msra.mxu0 0
        %722 = vmatprep.subr.bf16.mxu0 0
        %723 = vmatpush1.bf16.msra.mxu0 0
        %724 = vmatprep.subr.bf16.mxu0 0
        %725 = vmatpush1.bf16.msra.mxu0 0
        %726 = vmatprep.subr.bf16.mxu0 0
        %727 = vmatpush1.bf16.msra.mxu0 0
        %728 = vmatprep.subr.bf16.mxu0 0
        %729 = vmatpush1.bf16.msra.mxu0 0
        %730 = vmatprep.subr.bf16.mxu0 0
        %731 = vmatpush1.bf16.msra.mxu0 %v690
        %732 = vmatprep.subr.bf16.mxu0 0
        %733 = vmatpush1.bf16.msra.mxu0 %v689
        %734 = vmatprep.subr.bf16.mxu0 0
        %735 = vmatpush2.bf16.msra.mxu0 0
        %736 = vmatprep.subr.bf16.mxu0 0
        %737 = vmatpush2.bf16.msra.mxu0 0
        %738 = vmatprep.subr.bf16.mxu0 0
        %739 = vmatpush2.bf16.msra.mxu0 0
        %740 = vmatprep.subr.bf16.mxu0 0
        %741 = vmatpush2.bf16.msra.mxu0 0
        %742 = vmatprep.subr.bf16.mxu0 0
        %743 = vmatpush2.bf16.msra.mxu0 0
        %744 = vmatprep.subr.bf16.mxu0 0
        %745 = vmatpush2.bf16.msra.mxu0 0
        %746 = vmatprep.subr.bf16.mxu0 0
        %747 = vmatpush2.bf16.msra.mxu0 0
        %748 = vmatprep.subr.bf16.mxu0 0
        %749 = vmatpush2.bf16.msra.mxu0 0
        %750 = vmatprep.mubr.bf16.mxu0 0
        %751 = vmatmul.mubr.bf16.gmra.mxu0 %v695
        %v752 = vpop.f32.mrf.mxu0
        %v753 = vadd.f32 %v639, %v752
        %v754 = vpop.f32.mrf.mxu0
        %v755 = vpop.f32.mrf.mxu0
        %v756 = vadd.f32 %v639, %v755
        %v757 = vpop.f32.mrf.mxu0
        %758 = vmatprep.mubr.bf16.mxu0 0
        %759 = vmatmul.mubr.bf16.gmra.mxu0 %v698
        %v760 = vpop.f32.mrf.mxu0
        %v761 = vadd.f32 %v639, %v760
        %v762 = vpop.f32.mrf.mxu0
        %v763 = vpop.f32.mrf.mxu0
        %v764 = vadd.f32 %v639, %v763
        %v765 = vpop.f32.mrf.mxu0
        %766 = vmatprep.mubr.bf16.mxu0 0
        %767 = vmatmul.mubr.bf16.gmra.mxu0 %v701
        %v768 = vpop.f32.mrf.mxu0
        %v769 = vadd.f32 %v639, %v768
        %v770 = vpop.f32.mrf.mxu0
        %v771 = vpop.f32.mrf.mxu0
        %v772 = vadd.f32 %v639, %v771
        %v773 = vpop.f32.mrf.mxu0
        %774 = vmatprep.mubr.bf16.mxu0 0
        %775 = vmatmul.mubr.bf16.gmra.mxu0 %v704
        %v776 = vpop.f32.mrf.mxu0
        %v777 = vadd.f32 %v639, %v776
        %v778 = vpop.f32.mrf.mxu0
        %v779 = vpop.f32.mrf.mxu0
        %v780 = vadd.f32 %v639, %v779
        %v781 = vpop.f32.mrf.mxu0
        %782 = vmatprep.mubr.bf16.mxu0 0
        %783 = vmatmul.mubr.bf16.gmra.mxu0 %v707
        %v784 = vpop.f32.mrf.mxu0
        %v785 = vadd.f32 %v639, %v784
        %v786 = vpop.f32.mrf.mxu0
        %v787 = vpop.f32.mrf.mxu0
        %v788 = vadd.f32 %v639, %v787
        %v789 = vpop.f32.mrf.mxu0
        %790 = vmatprep.mubr.bf16.mxu0 0
        %791 = vmatmul.mubr.bf16.gmra.mxu0 %v710
        %v792 = vpop.f32.mrf.mxu0
        %v793 = vadd.f32 %v639, %v792
        %v794 = vpop.f32.mrf.mxu0
        %v795 = vpop.f32.mrf.mxu0
        %v796 = vadd.f32 %v639, %v795
        %v797 = vpop.f32.mrf.mxu0
        %798 = vmatprep.mubr.bf16.mxu0 0
        %799 = vmatmul.mubr.bf16.gmra.mxu0 %v713
        %v800 = vpop.f32.mrf.mxu0
        %v801 = vadd.f32 %v639, %v800
        %v802 = vpop.f32.mrf.mxu0
        %v803 = vpop.f32.mrf.mxu0
        %v804 = vadd.f32 %v639, %v803
        %v805 = vpop.f32.mrf.mxu0
        %806 = vmatprep.mubr.bf16.mxu0 0
        %807 = vmatmul.mubr.bf16.gmra.mxu0 %v716
        %v808 = vpop.f32.mrf.mxu0
        %v809 = vadd.f32 %v639, %v808
        %v810 = vpop.f32.mrf.mxu0
        %v811 = vpop.f32.mrf.mxu0
        %v812 = vadd.f32 %v639, %v811
        %v813 = vpop.f32.mrf.mxu0
        %814 = vdwg.mxu0
        %v815 = vpack.c.bf16 %v611, %v608
        %v816 = vpack.c.bf16 %v756, %v753
        %v817 = vpack.c.bf16 %v764, %v761
        %v818 = vpack.c.bf16 %v772, %v769
        %v819 = vpack.c.bf16 %v780, %v777
        %v820 = vpack.c.bf16 %v788, %v785
        %v821 = vpack.c.bf16 %v796, %v793
        %v822 = vpack.c.bf16 %v804, %v801
        %v823 = vpack.c.bf16 %v812, %v809
        %vm824 = vcmask 64512
        %v826 = vsel %vm824, %v815, 0
        %v829 = vsel %vm824, %v816, 0
        %v832 = vsel %vm824, %v817, 0
        %v835 = vsel %vm824, %v818, 0
        %v838 = vsel %vm824, %v819, 0
        %v841 = vsel %vm824, %v820, 0
        %v844 = vsel %vm824, %v821, 0
        %v847 = vsel %vm824, %v822, 0
        %v850 = vsel %vm824, %v823, 0
        %852 = vmatprep.subr.bf16.mxu0 0
        %853 = vmatpush1.bf16.xpose.msra.mxu0 %v850
        %854 = vmatprep.subr.bf16.mxu0 0
        %855 = vmatpush1.bf16.xpose.msra.mxu0 %v847
        %856 = vmatprep.subr.bf16.mxu0 0
        %857 = vmatpush1.bf16.xpose.msra.mxu0 %v844
        %858 = vmatprep.subr.bf16.mxu0 0
        %859 = vmatpush1.bf16.xpose.msra.mxu0 %v841
        %860 = vmatprep.subr.bf16.mxu0 0
        %861 = vmatpush1.bf16.xpose.msra.mxu0 %v838
        %862 = vmatprep.subr.bf16.mxu0 0
        %863 = vmatpush1.bf16.xpose.msra.mxu0 %v835
        %864 = vmatprep.subr.bf16.mxu0 0
        %865 = vmatpush1.bf16.xpose.msra.mxu0 %v832
        %866 = vmatprep.subr.bf16.mxu0 0
        %867 = vmatpush1.bf16.xpose.msra.mxu0 %v829
        %868 = vmatprep.subr.bf16.mxu0 0
        %869 = vmatpush2.bf16.xpose.msra.mxu0 0
        %870 = vmatprep.subr.bf16.mxu0 0
        %871 = vmatpush2.bf16.xpose.msra.mxu0 0
        %872 = vmatprep.subr.bf16.mxu0 0
        %873 = vmatpush2.bf16.xpose.msra.mxu0 0
        %874 = vmatprep.subr.bf16.mxu0 0
        %875 = vmatpush2.bf16.xpose.msra.mxu0 0
        %876 = vmatprep.subr.bf16.mxu0 0
        %877 = vmatpush2.bf16.xpose.msra.mxu0 0
        %878 = vmatprep.subr.bf16.mxu0 0
        %879 = vmatpush2.bf16.xpose.msra.mxu0 0
        %880 = vmatprep.subr.bf16.mxu0 0
        %881 = vmatpush2.bf16.xpose.msra.mxu0 0
        %882 = vmatprep.subr.bf16.mxu0 0
        %883 = vmatpush2.bf16.xpose.msra.mxu0 0
        %884 = vmatprep.mubr.bf16.mxu0 0
        %885 = vmatmul.mubr.bf16.gmra.mxu0 %v826
        %v886 = vpop.f32.mrf.mxu0
        %v887 = vadd.f32 %v499, %v886
        %v888 = vpop.f32.mrf.mxu0
        %v889 = vpop.f32.mrf.mxu0
        %v890 = vadd.f32 %v499, %v889
        %v891 = vpop.f32.mrf.mxu0
        %892 = vdwg.mxu0
        %893 = vmax.xlane.f32.xlu0 %v887
        %v894 = vpop.xlane.xlu0 %893
        %895 = vmax.xlane.f32.xlu0 %v890
        %v896 = vpop.xlane.xlu0 %895
        %v897 = vsub.f32 %v887, %v894
        %v898 = vsub.f32 %v890, %v896
        %v899 = vmul.f32 %v897, 1.442695
        %v900 = vpow.pop %v899
        %v901 = vmul.f32 %v898, 1.442695
        %v902 = vpow.pop %v901
        %903 = vadd.xlane.f32.xlu0 %v900
        %v904 = vpop.xlane.xlu0 %903
        %905 = vadd.xlane.f32.xlu0 %v902
        %v906 = vpop.xlane.xlu0 %905
        %v907 = vrcp.pop %v904
        %v908 = vrcp.pop %v906
        %v909 = vmul.f32 %v900, %v907
        %v910 = vmul.f32 %v902, %v908
        %v911 = vadd.f32 %v909, 0.0
        %v912 = vadd.f32 %v910, 0.0
        %v913 = vpack.c.bf16 %v910, %v909
        %922 = vrot.lane.b32.xlu0 %v816, 96
        %v923 = vpop.permute.xlu0 %922
        %924 = vrot.lane.b32.xlu0 %v817, 96
        %v925 = vpop.permute.xlu0 %924
        %926 = vrot.lane.b32.xlu0 %v818, 96
        %v927 = vpop.permute.xlu0 %926
        %928 = vrot.lane.b32.xlu0 %v819, 96
        %v929 = vpop.permute.xlu0 %928
        %930 = vrot.lane.b32.xlu0 %v820, 96
        %v931 = vpop.permute.xlu0 %930
        %932 = vrot.lane.b32.xlu0 %v821, 96
        %v933 = vpop.permute.xlu0 %932
        %934 = vrot.lane.b32.xlu0 %v822, 96
        %v935 = vpop.permute.xlu0 %934
        %936 = vrot.lane.b32.xlu0 %v823, 96
        %v937 = vpop.permute.xlu0 %936
        %946 = vmatprep.subr.bf16.mxu0 0
        %947 = vmatpush1.bf16.msra.mxu0 %v937
        %948 = vmatprep.subr.bf16.mxu0 0
        %949 = vmatpush1.bf16.msra.mxu0 %v935
        %950 = vmatprep.subr.bf16.mxu0 0
        %951 = vmatpush1.bf16.msra.mxu0 %v933
        %952 = vmatprep.subr.bf16.mxu0 0
        %953 = vmatpush1.bf16.msra.mxu0 %v931
        %954 = vmatprep.subr.bf16.mxu0 0
        %955 = vmatpush1.bf16.msra.mxu0 %v929
        %956 = vmatprep.subr.bf16.mxu0 0
        %957 = vmatpush1.bf16.msra.mxu0 %v927
        %958 = vmatprep.subr.bf16.mxu0 0
        %959 = vmatpush1.bf16.msra.mxu0 %v925
        %960 = vmatprep.subr.bf16.mxu0 0
        %961 = vmatpush1.bf16.msra.mxu0 %v923
        %962 = vmatprep.subr.bf16.mxu0 0
        %963 = vmatpush2.bf16.msra.mxu0 0
        %964 = vmatprep.subr.bf16.mxu0 0
        %965 = vmatpush2.bf16.msra.mxu0 0
        %966 = vmatprep.subr.bf16.mxu0 0
        %967 = vmatpush2.bf16.msra.mxu0 0
        %968 = vmatprep.subr.bf16.mxu0 0
        %969 = vmatpush2.bf16.msra.mxu0 0
        %970 = vmatprep.subr.bf16.mxu0 0
        %971 = vmatpush2.bf16.msra.mxu0 0
        %972 = vmatprep.subr.bf16.mxu0 0
        %973 = vmatpush2.bf16.msra.mxu0 0
        %974 = vmatprep.subr.bf16.mxu0 0
        %975 = vmatpush2.bf16.msra.mxu0 0
        %976 = vmatprep.subr.bf16.mxu0 0
        %977 = vmatpush2.bf16.msra.mxu0 0
        %978 = vmatprep.mubr.bf16.mxu0 0
        %979 = vmatmul.mubr.bf16.gmra.mxu0 %v913
        %v980 = vpop.f32.mrf.mxu0
        %v981 = vadd.f32 0.0, %v980
        %v982 = vpop.f32.mrf.mxu0
        %v983 = vpop.f32.mrf.mxu0
        %v984 = vadd.f32 0.0, %v983
        %v985 = vpop.f32.mrf.mxu0
        %986 = vdwg.mxu0
        %988 = vrot.lane.b32.xlu0 %v815, 120
        %v989 = vpop.permute.xlu0 %988
        %990 = vrot.lane.b32.xlu0 %v816, 120
        %v991 = vpop.permute.xlu0 %990
        %992 = vrot.lane.b32.xlu0 %v817, 120
        %v993 = vpop.permute.xlu0 %992
        %994 = vrot.lane.b32.xlu0 %v818, 120
        %v995 = vpop.permute.xlu0 %994
        %996 = vrot.lane.b32.xlu0 %v819, 120
        %v997 = vpop.permute.xlu0 %996
        %998 = vrot.lane.b32.xlu0 %v820, 120
        %v999 = vpop.permute.xlu0 %998
        %1000 = vrot.lane.b32.xlu0 %v821, 120
        %v1001 = vpop.permute.xlu0 %1000
        %1002 = vrot.lane.b32.xlu0 %v822, 120
        %v1003 = vpop.permute.xlu0 %1002
        %1004 = vrot.lane.b32.xlu0 %v823, 120
        %v1005 = vpop.permute.xlu0 %1004
        %v1007 = vsel %vm824, %v989, 0
        %v1010 = vsel %vm824, %v991, 0
        %v1013 = vsel %vm824, %v993, 0
        %v1016 = vsel %vm824, %v995, 0
        %v1019 = vsel %vm824, %v997, 0
        %v1022 = vsel %vm824, %v999, 0
        %v1025 = vsel %vm824, %v1001, 0
        %v1028 = vsel %vm824, %v1003, 0
        %v1031 = vsel %vm824, %v1005, 0
        %1033 = vmatprep.subr.bf16.mxu0 0
        %1034 = vmatpush1.bf16.xpose.msra.mxu0 %v1031
        %1035 = vmatprep.subr.bf16.mxu0 0
        %1036 = vmatpush1.bf16.xpose.msra.mxu0 %v1028
        %1037 = vmatprep.subr.bf16.mxu0 0
        %1038 = vmatpush1.bf16.xpose.msra.mxu0 %v1025
        %1039 = vmatprep.subr.bf16.mxu0 0
        %1040 = vmatpush1.bf16.xpose.msra.mxu0 %v1022
        %1041 = vmatprep.subr.bf16.mxu0 0
        %1042 = vmatpush1.bf16.xpose.msra.mxu0 %v1019
        %1043 = vmatprep.subr.bf16.mxu0 0
        %1044 = vmatpush1.bf16.xpose.msra.mxu0 %v1016
        %1045 = vmatprep.subr.bf16.mxu0 0
        %1046 = vmatpush1.bf16.xpose.msra.mxu0 %v1013
        %1047 = vmatprep.subr.bf16.mxu0 0
        %1048 = vmatpush1.bf16.xpose.msra.mxu0 %v1010
        %1049 = vmatprep.subr.bf16.mxu0 0
        %1050 = vmatpush2.bf16.xpose.msra.mxu0 0
        %1051 = vmatprep.subr.bf16.mxu0 0
        %1052 = vmatpush2.bf16.xpose.msra.mxu0 0
        %1053 = vmatprep.subr.bf16.mxu0 0
        %1054 = vmatpush2.bf16.xpose.msra.mxu0 0
        %1055 = vmatprep.subr.bf16.mxu0 0
        %1056 = vmatpush2.bf16.xpose.msra.mxu0 0
        %1057 = vmatprep.subr.bf16.mxu0 0
        %1058 = vmatpush2.bf16.xpose.msra.mxu0 0
        %1059 = vmatprep.subr.bf16.mxu0 0
        %1060 = vmatpush2.bf16.xpose.msra.mxu0 0
        %1061 = vmatprep.subr.bf16.mxu0 0
        %1062 = vmatpush2.bf16.xpose.msra.mxu0 0
        %1063 = vmatprep.subr.bf16.mxu0 0
        %1064 = vmatpush2.bf16.xpose.msra.mxu0 0
        %1065 = vmatprep.mubr.bf16.mxu0 0
        %1066 = vmatmul.mubr.bf16.gmra.mxu0 %v1007
        %v1067 = vpop.f32.mrf.mxu0
        %v1068 = vadd.f32 %v499, %v1067
        %v1069 = vpop.f32.mrf.mxu0
        %v1070 = vpop.f32.mrf.mxu0
        %v1071 = vadd.f32 %v499, %v1070
        %v1072 = vpop.f32.mrf.mxu0
        %1073 = vdwg.mxu0
        %1074 = vmax.xlane.f32.xlu0 %v1068
        %v1075 = vpop.xlane.xlu0 %1074
        %1076 = vmax.xlane.f32.xlu0 %v1071
        %v1077 = vpop.xlane.xlu0 %1076
        %v1078 = vsub.f32 %v1068, %v1075
        %v1079 = vsub.f32 %v1071, %v1077
        %v1080 = vmul.f32 %v1078, 1.442695
        %v1081 = vpow.pop %v1080
        %v1082 = vmul.f32 %v1079, 1.442695
        %v1083 = vpow.pop %v1082
        %1084 = vadd.xlane.f32.xlu0 %v1081
        %v1085 = vpop.xlane.xlu0 %1084
        %1086 = vadd.xlane.f32.xlu0 %v1083
        %v1087 = vpop.xlane.xlu0 %1086
        %v1088 = vrcp.pop %v1085
        %v1089 = vrcp.pop %v1087
        %v1090 = vmul.f32 %v1081, %v1088
        %v1091 = vmul.f32 %v1083, %v1089
        %v1092 = vadd.f32 %v911, %v1090
        %v1093 = vadd.f32 %v912, %v1091
        %v1094 = vpack.c.bf16 %v1091, %v1090
        %1095 = vrot.lane.b32.xlu0 %v816, 88
        %v1096 = vpop.permute.xlu0 %1095
        %1097 = vrot.lane.b32.xlu0 %v817, 88
        %v1098 = vpop.permute.xlu0 %1097
        %1099 = vrot.lane.b32.xlu0 %v818, 88
        %v1100 = vpop.permute.xlu0 %1099
        %1101 = vrot.lane.b32.xlu0 %v819, 88
        %v1102 = vpop.permute.xlu0 %1101
        %1103 = vrot.lane.b32.xlu0 %v820, 88
        %v1104 = vpop.permute.xlu0 %1103
        %1105 = vrot.lane.b32.xlu0 %v821, 88
        %v1106 = vpop.permute.xlu0 %1105
        %1107 = vrot.lane.b32.xlu0 %v822, 88
        %v1108 = vpop.permute.xlu0 %1107
        %1109 = vrot.lane.b32.xlu0 %v823, 88
        %v1110 = vpop.permute.xlu0 %1109
        %1119 = vmatprep.subr.bf16.mxu0 0
        %1120 = vmatpush1.bf16.msra.mxu0 %v1110
        %1121 = vmatprep.subr.bf16.mxu0 0
        %1122 = vmatpush1.bf16.msra.mxu0 %v1108
        %1123 = vmatprep.subr.bf16.mxu0 0
        %1124 = vmatpush1.bf16.msra.mxu0 %v1106
        %1125 = vmatprep.subr.bf16.mxu0 0
        %1126 = vmatpush1.bf16.msra.mxu0 %v1104
        %1127 = vmatprep.subr.bf16.mxu0 0
        %1128 = vmatpush1.bf16.msra.mxu0 %v1102
        %1129 = vmatprep.subr.bf16.mxu0 0
        %1130 = vmatpush1.bf16.msra.mxu0 %v1100
        %1131 = vmatprep.subr.bf16.mxu0 0
        %1132 = vmatpush1.bf16.msra.mxu0 %v1098
        %1133 = vmatprep.subr.bf16.mxu0 0
        %1134 = vmatpush1.bf16.msra.mxu0 %v1096
        %1135 = vmatprep.subr.bf16.mxu0 0
        %1136 = vmatpush2.bf16.msra.mxu0 0
        %1137 = vmatprep.subr.bf16.mxu0 0
        %1138 = vmatpush2.bf16.msra.mxu0 0
        %1139 = vmatprep.subr.bf16.mxu0 0
        %1140 = vmatpush2.bf16.msra.mxu0 0
        %1141 = vmatprep.subr.bf16.mxu0 0
        %1142 = vmatpush2.bf16.msra.mxu0 0
        %1143 = vmatprep.subr.bf16.mxu0 0
        %1144 = vmatpush2.bf16.msra.mxu0 0
        %1145 = vmatprep.subr.bf16.mxu0 0
        %1146 = vmatpush2.bf16.msra.mxu0 0
        %1147 = vmatprep.subr.bf16.mxu0 0
        %1148 = vmatpush2.bf16.msra.mxu0 0
        %1149 = vmatprep.subr.bf16.mxu0 0
        %1150 = vmatpush2.bf16.msra.mxu0 0
        %1151 = vmatprep.mubr.bf16.mxu0 0
        %1152 = vmatmul.mubr.bf16.gmra.mxu0 %v1094
        %v1153 = vpop.f32.mrf.mxu0
        %v1154 = vadd.f32 0.0, %v1153
        %v1155 = vpop.f32.mrf.mxu0
        %v1156 = vpop.f32.mrf.mxu0
        %v1157 = vadd.f32 0.0, %v1156
        %v1158 = vpop.f32.mrf.mxu0
        %1159 = vdwg.mxu0
        %1160 = vrot.lane.b32.xlu0 %v815, 112
        %v1161 = vpop.permute.xlu0 %1160
        %1162 = vrot.lane.b32.xlu0 %v816, 112
        %v1163 = vpop.permute.xlu0 %1162
        %1164 = vrot.lane.b32.xlu0 %v817, 112
        %v1165 = vpop.permute.xlu0 %1164
        %1166 = vrot.lane.b32.xlu0 %v818, 112
        %v1167 = vpop.permute.xlu0 %1166
        %1168 = vrot.lane.b32.xlu0 %v819, 112
        %v1169 = vpop.permute.xlu0 %1168
        %1170 = vrot.lane.b32.xlu0 %v820, 112
        %v1171 = vpop.permute.xlu0 %1170
        %1172 = vrot.lane.b32.xlu0 %v821, 112
        %v1173 = vpop.permute.xlu0 %1172
        %1174 = vrot.lane.b32.xlu0 %v822, 112
        %v1175 = vpop.permute.xlu0 %1174
        %1176 = vrot.lane.b32.xlu0 %v823, 112
        %v1177 = vpop.permute.xlu0 %1176
        %v1179 = vsel %vm824, %v1161, 0
        %v1182 = vsel %vm824, %v1163, 0
        %v1185 = vsel %vm824, %v1165, 0
        %v1188 = vsel %vm824, %v1167, 0
        %v1191 = vsel %vm824, %v1169, 0
        %v1194 = vsel %vm824, %v1171, 0
        %v1197 = vsel %vm824, %v1173, 0
        %v1200 = vsel %vm824, %v1175, 0
        %v1203 = vsel %vm824, %v1177, 0
        %1205 = vmatprep.subr.bf16.mxu0 0
        %1206 = vmatpush1.bf16.xpose.msra.mxu0 %v1203
        %1207 = vmatprep.subr.bf16.mxu0 0
        %1208 = vmatpush1.bf16.xpose.msra.mxu0 %v1200
        %1209 = vmatprep.subr.bf16.mxu0 0
        %1210 = vmatpush1.bf16.xpose.msra.mxu0 %v1197
        %1211 = vmatprep.subr.bf16.mxu0 0
        %1212 = vmatpush1.bf16.xpose.msra.mxu0 %v1194
        %1213 = vmatprep.subr.bf16.mxu0 0
        %1214 = vmatpush1.bf16.xpose.msra.mxu0 %v1191
        %1215 = vmatprep.subr.bf16.mxu0 0
        %1216 = vmatpush1.bf16.xpose.msra.mxu0 %v1188
        %1217 = vmatprep.subr.bf16.mxu0 0
        %1218 = vmatpush1.bf16.xpose.msra.mxu0 %v1185
        %1219 = vmatprep.subr.bf16.mxu0 0
        %1220 = vmatpush1.bf16.xpose.msra.mxu0 %v1182
        %1221 = vmatprep.subr.bf16.mxu0 0
        %1222 = vmatpush2.bf16.xpose.msra.mxu0 0
        %1223 = vmatprep.subr.bf16.mxu0 0
        %1224 = vmatpush2.bf16.xpose.msra.mxu0 0
        %1225 = vmatprep.subr.bf16.mxu0 0
        %1226 = vmatpush2.bf16.xpose.msra.mxu0 0
        %1227 = vmatprep.subr.bf16.mxu0 0
        %1228 = vmatpush2.bf16.xpose.msra.mxu0 0
        %1229 = vmatprep.subr.bf16.mxu0 0
        %1230 = vmatpush2.bf16.xpose.msra.mxu0 0
        %1231 = vmatprep.subr.bf16.mxu0 0
        %1232 = vmatpush2.bf16.xpose.msra.mxu0 0
        %1233 = vmatprep.subr.bf16.mxu0 0
        %1234 = vmatpush2.bf16.xpose.msra.mxu0 0
        %1235 = vmatprep.subr.bf16.mxu0 0
        %1236 = vmatpush2.bf16.xpose.msra.mxu0 0
        %1237 = vmatprep.mubr.bf16.mxu0 0
        %1238 = vmatmul.mubr.bf16.gmra.mxu0 %v1179
        %v1239 = vpop.f32.mrf.mxu0
        %v1240 = vadd.f32 %v499, %v1239
        %v1241 = vpop.f32.mrf.mxu0
        %v1242 = vpop.f32.mrf.mxu0
        %v1243 = vadd.f32 %v499, %v1242
        %v1244 = vpop.f32.mrf.mxu0
        %1245 = vdwg.mxu0
        %1246 = vmax.xlane.f32.xlu0 %v1240
        %v1247 = vpop.xlane.xlu0 %1246
        %1248 = vmax.xlane.f32.xlu0 %v1243
        %v1249 = vpop.xlane.xlu0 %1248
        %v1250 = vsub.f32 %v1240, %v1247
        %v1251 = vsub.f32 %v1243, %v1249
        %v1252 = vmul.f32 %v1250, 1.442695
        %v1253 = vpow.pop %v1252
        %v1254 = vmul.f32 %v1251, 1.442695
        %v1255 = vpow.pop %v1254
        %1256 = vadd.xlane.f32.xlu0 %v1253
        %v1257 = vpop.xlane.xlu0 %1256
        %1258 = vadd.xlane.f32.xlu0 %v1255
        %v1259 = vpop.xlane.xlu0 %1258
        %v1260 = vrcp.pop %v1257
        %v1261 = vrcp.pop %v1259
        %v1262 = vmul.f32 %v1253, %v1260
        %v1263 = vmul.f32 %v1255, %v1261
        %v1264 = vadd.f32 %v1092, %v1262
        %v1265 = vadd.f32 %v1093, %v1263
        %v1266 = vpack.c.bf16 %v1263, %v1262
        %1267 = vrot.lane.b32.xlu0 %v816, 80
        %v1268 = vpop.permute.xlu0 %1267
        %1269 = vrot.lane.b32.xlu0 %v817, 80
        %v1270 = vpop.permute.xlu0 %1269
        %1271 = vrot.lane.b32.xlu0 %v818, 80
        %v1272 = vpop.permute.xlu0 %1271
        %1273 = vrot.lane.b32.xlu0 %v819, 80
        %v1274 = vpop.permute.xlu0 %1273
        %1275 = vrot.lane.b32.xlu0 %v820, 80
        %v1276 = vpop.permute.xlu0 %1275
        %1277 = vrot.lane.b32.xlu0 %v821, 80
        %v1278 = vpop.permute.xlu0 %1277
        %1279 = vrot.lane.b32.xlu0 %v822, 80
        %v1280 = vpop.permute.xlu0 %1279
        %1281 = vrot.lane.b32.xlu0 %v823, 80
        %v1282 = vpop.permute.xlu0 %1281
        %1291 = vmatprep.subr.bf16.mxu0 0
        %1292 = vmatpush1.bf16.msra.mxu0 %v1282
        %1293 = vmatprep.subr.bf16.mxu0 0
        %1294 = vmatpush1.bf16.msra.mxu0 %v1280
        %1295 = vmatprep.subr.bf16.mxu0 0
        %1296 = vmatpush1.bf16.msra.mxu0 %v1278
        %1297 = vmatprep.subr.bf16.mxu0 0
        %1298 = vmatpush1.bf16.msra.mxu0 %v1276
        %1299 = vmatprep.subr.bf16.mxu0 0
        %1300 = vmatpush1.bf16.msra.mxu0 %v1274
        %1301 = vmatprep.subr.bf16.mxu0 0
        %1302 = vmatpush1.bf16.msra.mxu0 %v1272
        %1303 = vmatprep.subr.bf16.mxu0 0
        %1304 = vmatpush1.bf16.msra.mxu0 %v1270
        %1305 = vmatprep.subr.bf16.mxu0 0
        %1306 = vmatpush1.bf16.msra.mxu0 %v1268
        %1307 = vmatprep.subr.bf16.mxu0 0
        %1308 = vmatpush2.bf16.msra.mxu0 0
        %1309 = vmatprep.subr.bf16.mxu0 0
        %1310 = vmatpush2.bf16.msra.mxu0 0
        %1311 = vmatprep.subr.bf16.mxu0 0
        %1312 = vmatpush2.bf16.msra.mxu0 0
        %1313 = vmatprep.subr.bf16.mxu0 0
        %1314 = vmatpush2.bf16.msra.mxu0 0
        %1315 = vmatprep.subr.bf16.mxu0 0
        %1316 = vmatpush2.bf16.msra.mxu0 0
        %1317 = vmatprep.subr.bf16.mxu0 0
        %1318 = vmatpush2.bf16.msra.mxu0 0
        %1319 = vmatprep.subr.bf16.mxu0 0
        %1320 = vmatpush2.bf16.msra.mxu0 0
        %1321 = vmatprep.subr.bf16.mxu0 0
        %1322 = vmatpush2.bf16.msra.mxu0 0
        %1323 = vmatprep.mubr.bf16.mxu0 0
        %1324 = vmatmul.mubr.bf16.gmra.mxu0 %v1266
        %v1325 = vpop.f32.mrf.mxu0
        %v1326 = vadd.f32 0.0, %v1325
        %v1327 = vpop.f32.mrf.mxu0
        %v1328 = vpop.f32.mrf.mxu0
        %v1329 = vadd.f32 0.0, %v1328
        %v1330 = vpop.f32.mrf.mxu0
        %1331 = vdwg.mxu0
        %1332 = vrot.lane.b32.xlu0 %v815, 104
        %v1333 = vpop.permute.xlu0 %1332
        %1334 = vrot.lane.b32.xlu0 %v816, 104
        %v1335 = vpop.permute.xlu0 %1334
        %1336 = vrot.lane.b32.xlu0 %v817, 104
        %v1337 = vpop.permute.xlu0 %1336
        %1338 = vrot.lane.b32.xlu0 %v818, 104
        %v1339 = vpop.permute.xlu0 %1338
        %1340 = vrot.lane.b32.xlu0 %v819, 104
        %v1341 = vpop.permute.xlu0 %1340
        %1342 = vrot.lane.b32.xlu0 %v820, 104
        %v1343 = vpop.permute.xlu0 %1342
        %1344 = vrot.lane.b32.xlu0 %v821, 104
        %v1345 = vpop.permute.xlu0 %1344
        %1346 = vrot.lane.b32.xlu0 %v822, 104
        %v1347 = vpop.permute.xlu0 %1346
        %1348 = vrot.lane.b32.xlu0 %v823, 104
        %v1349 = vpop.permute.xlu0 %1348
        %v1351 = vsel %vm824, %v1333, 0
        %v1354 = vsel %vm824, %v1335, 0
        %v1357 = vsel %vm824, %v1337, 0
        %v1360 = vsel %vm824, %v1339, 0
        %v1363 = vsel %vm824, %v1341, 0
        %v1366 = vsel %vm824, %v1343, 0
        %v1369 = vsel %vm824, %v1345, 0
        %v1372 = vsel %vm824, %v1347, 0
        %v1375 = vsel %vm824, %v1349, 0
        %1377 = vmatprep.subr.bf16.mxu0 0
        %1378 = vmatpush1.bf16.xpose.msra.mxu0 %v1375
        %1379 = vmatprep.subr.bf16.mxu0 0
        %1380 = vmatpush1.bf16.xpose.msra.mxu0 %v1372
        %1381 = vmatprep.subr.bf16.mxu0 0
        %1382 = vmatpush1.bf16.xpose.msra.mxu0 %v1369
        %1383 = vmatprep.subr.bf16.mxu0 0
        %1384 = vmatpush1.bf16.xpose.msra.mxu0 %v1366
        %1385 = vmatprep.subr.bf16.mxu0 0
        %1386 = vmatpush1.bf16.xpose.msra.mxu0 %v1363
        %1387 = vmatprep.subr.bf16.mxu0 0
        %1388 = vmatpush1.bf16.xpose.msra.mxu0 %v1360
        %1389 = vmatprep.subr.bf16.mxu0 0
        %1390 = vmatpush1.bf16.xpose.msra.mxu0 %v1357
        %1391 = vmatprep.subr.bf16.mxu0 0
        %1392 = vmatpush1.bf16.xpose.msra.mxu0 %v1354
        %1393 = vmatprep.subr.bf16.mxu0 0
        %1394 = vmatpush2.bf16.xpose.msra.mxu0 0
        %1395 = vmatprep.subr.bf16.mxu0 0
        %1396 = vmatpush2.bf16.xpose.msra.mxu0 0
        %1397 = vmatprep.subr.bf16.mxu0 0
        %1398 = vmatpush2.bf16.xpose.msra.mxu0 0
        %1399 = vmatprep.subr.bf16.mxu0 0
        %1400 = vmatpush2.bf16.xpose.msra.mxu0 0
        %1401 = vmatprep.subr.bf16.mxu0 0
        %1402 = vmatpush2.bf16.xpose.msra.mxu0 0
        %1403 = vmatprep.subr.bf16.mxu0 0
        %1404 = vmatpush2.bf16.xpose.msra.mxu0 0
        %1405 = vmatprep.subr.bf16.mxu0 0
        %1406 = vmatpush2.bf16.xpose.msra.mxu0 0
        %1407 = vmatprep.subr.bf16.mxu0 0
        %1408 = vmatpush2.bf16.xpose.msra.mxu0 0
        %1409 = vmatprep.mubr.bf16.mxu0 0
        %1410 = vmatmul.mubr.bf16.gmra.mxu0 %v1351
        %v1411 = vpop.f32.mrf.mxu0
        %v1412 = vadd.f32 %v499, %v1411
        %v1413 = vpop.f32.mrf.mxu0
        %v1414 = vpop.f32.mrf.mxu0
        %v1415 = vadd.f32 %v499, %v1414
        %v1416 = vpop.f32.mrf.mxu0
        %1417 = vdwg.mxu0
        %1418 = vmax.xlane.f32.xlu0 %v1412
        %v1419 = vpop.xlane.xlu0 %1418
        %1420 = vmax.xlane.f32.xlu0 %v1415
        %v1421 = vpop.xlane.xlu0 %1420
        %v1422 = vsub.f32 %v1412, %v1419
        %v1423 = vsub.f32 %v1415, %v1421
        %v1424 = vmul.f32 %v1422, 1.442695
        %v1425 = vpow.pop %v1424
        %v1426 = vmul.f32 %v1423, 1.442695
        %v1427 = vpow.pop %v1426
        %1428 = vadd.xlane.f32.xlu0 %v1425
        %v1429 = vpop.xlane.xlu0 %1428
        %1430 = vadd.xlane.f32.xlu0 %v1427
        %v1431 = vpop.xlane.xlu0 %1430
        %v1432 = vrcp.pop %v1429
        %v1433 = vrcp.pop %v1431
        %v1434 = vmul.f32 %v1425, %v1432
        %v1435 = vmul.f32 %v1427, %v1433
        %v1436 = vadd.f32 %v1264, %v1434
        %v1437 = vadd.f32 %v1265, %v1435
        %v1438 = vpack.c.bf16 %v1435, %v1434
        %1439 = vrot.lane.b32.xlu0 %v816, 72
        %v1440 = vpop.permute.xlu0 %1439
        %1441 = vrot.lane.b32.xlu0 %v817, 72
        %v1442 = vpop.permute.xlu0 %1441
        %1443 = vrot.lane.b32.xlu0 %v818, 72
        %v1444 = vpop.permute.xlu0 %1443
        %1445 = vrot.lane.b32.xlu0 %v819, 72
        %v1446 = vpop.permute.xlu0 %1445
        %1447 = vrot.lane.b32.xlu0 %v820, 72
        %v1448 = vpop.permute.xlu0 %1447
        %1449 = vrot.lane.b32.xlu0 %v821, 72
        %v1450 = vpop.permute.xlu0 %1449
        %1451 = vrot.lane.b32.xlu0 %v822, 72
        %v1452 = vpop.permute.xlu0 %1451
        %1453 = vrot.lane.b32.xlu0 %v823, 72
        %v1454 = vpop.permute.xlu0 %1453
        %1463 = vmatprep.subr.bf16.mxu0 0
        %1464 = vmatpush1.bf16.msra.mxu0 %v1454
        %1465 = vmatprep.subr.bf16.mxu0 0
        %1466 = vmatpush1.bf16.msra.mxu0 %v1452
        %1467 = vmatprep.subr.bf16.mxu0 0
        %1468 = vmatpush1.bf16.msra.mxu0 %v1450
        %1469 = vmatprep.subr.bf16.mxu0 0
        %1470 = vmatpush1.bf16.msra.mxu0 %v1448
        %1471 = vmatprep.subr.bf16.mxu0 0
        %1472 = vmatpush1.bf16.msra.mxu0 %v1446
        %1473 = vmatprep.subr.bf16.mxu0 0
        %1474 = vmatpush1.bf16.msra.mxu0 %v1444
        %1475 = vmatprep.subr.bf16.mxu0 0
        %1476 = vmatpush1.bf16.msra.mxu0 %v1442
        %1477 = vmatprep.subr.bf16.mxu0 0
        %1478 = vmatpush1.bf16.msra.mxu0 %v1440
        %1479 = vmatprep.subr.bf16.mxu0 0
        %1480 = vmatpush2.bf16.msra.mxu0 0
        %1481 = vmatprep.subr.bf16.mxu0 0
        %1482 = vmatpush2.bf16.msra.mxu0 0
        %1483 = vmatprep.subr.bf16.mxu0 0
        %1484 = vmatpush2.bf16.msra.mxu0 0
        %1485 = vmatprep.subr.bf16.mxu0 0
        %1486 = vmatpush2.bf16.msra.mxu0 0
        %1487 = vmatprep.subr.bf16.mxu0 0
        %1488 = vmatpush2.bf16.msra.mxu0 0
        %1489 = vmatprep.subr.bf16.mxu0 0
        %1490 = vmatpush2.bf16.msra.mxu0 0
        %1491 = vmatprep.subr.bf16.mxu0 0
        %1492 = vmatpush2.bf16.msra.mxu0 0
        %1493 = vmatprep.subr.bf16.mxu0 0
        %1494 = vmatpush2.bf16.msra.mxu0 0
        %1495 = vmatprep.mubr.bf16.mxu0 0
        %1496 = vmatmul.mubr.bf16.gmra.mxu0 %v1438
        %v1497 = vpop.f32.mrf.mxu0
        %v1498 = vadd.f32 0.0, %v1497
        %v1499 = vpop.f32.mrf.mxu0
        %v1500 = vpop.f32.mrf.mxu0
        %v1501 = vadd.f32 0.0, %v1500
        %v1502 = vpop.f32.mrf.mxu0
        %1503 = vdwg.mxu0
        %1506 = vrot.lane.b32.xlu0 %v1154, 8
        %v1507 = vpop.permute.xlu0 %1506
        %1508 = vrot.lane.b32.xlu0 %v1157, 8
        %v1509 = vpop.permute.xlu0 %1508
        %1514 = vrot.lane.b32.xlu0 %v1326, 16
        %v1515 = vpop.permute.xlu0 %1514
        %1516 = vrot.lane.b32.xlu0 %v1329, 16
        %v1517 = vpop.permute.xlu0 %1516
        %1522 = vrot.lane.b32.xlu0 %v1498, 24
        %v1523 = vpop.permute.xlu0 %1522
        %1524 = vrot.lane.b32.xlu0 %v1501, 24
        %v1525 = vpop.permute.xlu0 %1524
        %v1528 = vsel %vm824, %v981, %v1507
        %v1529 = vsel %vm824, %v984, %v1509
        %vm1530 = vcmask 130048
        %v1531 = vsel %vm1530, %v1528, %v1515
        %v1532 = vsel %vm1530, %v1529, %v1517
        %vm1533 = vcmask 195584
        %v1534 = vsel %vm1533, %v1531, %v1523
        %v1535 = vsel %vm1533, %v1532, %v1525
        %v1536 = vpack.c.bf16 %v1535, %v1534
        %v1537 = vld [vmem:[%s7] sm:$0xf]
        %v1538 = vld [vmem:[%s7 + $0x4] sm:$0xf]
        %v1539 = vld [vmem:[%s7 + $0x8] sm:$0xf]
        %v1540 = vld [vmem:[%s7 + $0xc] sm:$0xf]
        %v1541 = vld [vmem:[%s8] sm:$0x1]
        %v1543 = vlaneseq
        %v1544 = vshrl.u32 %v1543, 7
        %v1545 = vsub.s32 0, %v1544
        %v1546 = vrot.slane %v1541, %v1545
        %v1552 = vunpack.c.l.b16 %v1537
        %v1553 = vunpack.c.l.b16 %v1538
        %v1554 = vunpack.c.l.b16 %v1539
        %v1555 = vunpack.c.l.b16 %v1540
        %v1556 = vpack.c.b16 %v1553, %v1552
        %v1557 = vpack.c.b16 %v1555, %v1554
        %v1561 = vsel %vm693, %v1536, 0
        %1563 = vmatprep.subr.bf16.mxu0 0
        %1564 = vmatpush1.bf16.msra.mxu0 0
        %1565 = vmatprep.subr.bf16.mxu0 0
        %1566 = vmatpush1.bf16.msra.mxu0 0
        %1567 = vmatprep.subr.bf16.mxu0 0
        %1568 = vmatpush1.bf16.msra.mxu0 0
        %1569 = vmatprep.subr.bf16.mxu0 0
        %1570 = vmatpush1.bf16.msra.mxu0 0
        %1571 = vmatprep.subr.bf16.mxu0 0
        %1572 = vmatpush1.bf16.msra.mxu0 0
        %1573 = vmatprep.subr.bf16.mxu0 0
        %1574 = vmatpush1.bf16.msra.mxu0 0
        %1575 = vmatprep.subr.bf16.mxu0 0
        %1576 = vmatpush1.bf16.msra.mxu0 %v1557
        %1577 = vmatprep.subr.bf16.mxu0 0
        %1578 = vmatpush1.bf16.msra.mxu0 %v1556
        %1579 = vmatprep.subr.bf16.mxu0 0
        %1580 = vmatpush2.bf16.msra.mxu0 0
        %1581 = vmatprep.subr.bf16.mxu0 0
        %1582 = vmatpush2.bf16.msra.mxu0 0
        %1583 = vmatprep.subr.bf16.mxu0 0
        %1584 = vmatpush2.bf16.msra.mxu0 0
        %1585 = vmatprep.subr.bf16.mxu0 0
        %1586 = vmatpush2.bf16.msra.mxu0 0
        %1587 = vmatprep.subr.bf16.mxu0 0
        %1588 = vmatpush2.bf16.msra.mxu0 0
        %1589 = vmatprep.subr.bf16.mxu0 0
        %1590 = vmatpush2.bf16.msra.mxu0 0
        %1591 = vmatprep.subr.bf16.mxu0 0
        %1592 = vmatpush2.bf16.msra.mxu0 0
        %1593 = vmatprep.subr.bf16.mxu0 0
        %1594 = vmatpush2.bf16.msra.mxu0 0
        %1595 = vmatprep.mubr.bf16.mxu0 0
        %1596 = vmatmul.mubr.bf16.gmra.mxu0 %v1561
        %v1597 = vpop.f32.mrf.mxu0
        %v1598 = vadd.f32 %v1546, %v1597
        %v1599 = vpop.f32.mrf.mxu0
        %v1600 = vpop.f32.mrf.mxu0
        %v1601 = vadd.f32 %v1546, %v1600
        %v1602 = vpop.f32.mrf.mxu0
        %1603 = vdwg.mxu0
        %v1604 = vadd.f32 %v1598, %v492
        %v1605 = vadd.f32 %v1601, %v493
        %v1606 = vlaneseq
        %v1607 = vand.u32 %v1606, 127
        %vm1608 = vcmp.lt.s32.totalorder %v1607, 32
        %v1609 = vsel %vm1608, 1, 0
        %vm1610 = vcmp.eq.s32.totalorder %v1609, 1
        %v1611 = vsel %vm1610, %v1604, 0.0
        %v1612 = vsel %vm1610, %v1605, 0.0
        %1613 = vadd.xlane.f32.xlu0 %v1611
        %v1614 = vpop.xlane.xlu0 %1613
        %1615 = vadd.xlane.f32.xlu0 %v1612
        %v1616 = vpop.xlane.xlu0 %1615
        %v1617 = vmul.f32 %v1614, 0.03125
        %v1618 = vmul.f32 %v1616, 0.03125
        %v1619 = vsub.f32 %v1604, %v1617
        %v1620 = vsub.f32 %v1605, %v1618
        %v1621 = vsel %vm1610, %v1619, 0.0
        %v1622 = vsel %vm1610, %v1620, 0.0
        %v1623 = vmul.f32 %v1621, %v1621
        %v1624 = vmul.f32 %v1622, %v1622
        %1625 = vadd.xlane.f32.xlu0 %v1623
        %v1626 = vpop.xlane.xlu0 %1625
        %1627 = vadd.xlane.f32.xlu0 %v1624
        %v1628 = vpop.xlane.xlu0 %1627
        %v1629 = vmul.f32 %v1626, 0.03125
        %v1630 = vmul.f32 %v1628, 0.03125
        %v1631 = vadd.f32 %v1629, 1e-05
        %v1632 = vadd.f32 %v1630, 1e-05
        %v1633 = vrsqrt.pop %v1631
        %v1634 = vrsqrt.pop %v1632
        %v1635 = vmul.f32 %v1619, %v1633
        %v1636 = vmul.f32 %v1620, %v1634
        %v1637 = vld [vmem:[%s9] sm:$0x1]
        %v1639 = vlaneseq
        %v1640 = vshrl.u32 %v1639, 7
        %v1641 = vsub.s32 0, %v1640
        %v1642 = vrot.slane %v1637, %v1641
        %v1644 = vmul.f32 %v1635, %v1642
        %v1645 = vmul.f32 %v1636, %v1642
        %v1646 = vld [vmem:[%s10] sm:$0x1]
        %v1648 = vlaneseq
        %v1649 = vshrl.u32 %v1648, 7
        %v1650 = vsub.s32 0, %v1649
        %v1651 = vrot.slane %v1646, %v1650
        %v1653 = vadd.f32 %v1644, %v1651
        %v1654 = vadd.f32 %v1645, %v1651
        %1655 = vst [vmem:[%s463] sm:$0xff] %v1653
        %1656 = vst [vmem:[%s463 + $0x8] sm:$0xff] %v1654
        %v1657 = vmul.f32 %v1436, 0.25
        %v1658 = vmul.f32 %v1437, 0.25
        %1659 = vst [vmem:[%s470] sm:$0xff] %v1657
        %1660 = vst [vmem:[%s470 + $0x8] sm:$0xff] %v1658
        %s1661 = sand.u32 %s300, 1
        %s1662 = scalar_lea.sflag [#allocation3], %s1661
        %s1663 = sand.u32 %s300, 1
        %s1664 = smul.addr %s1663, 16
        %s1665 = scalar_lea.vmem [#allocation2], %s1664
        %s1666 = sand.u32 %s328, 1
        %s1667 = scalar_lea.sflag [#allocation5], %s1666
        %s1668 = sand.u32 %s328, 1
        %s1669 = smul.addr %s1668, 16
        %s1670 = scalar_lea.vmem [#allocation4], %s1669
        // Predicated region
        $region65: #{tpu_custom_call.1} parent=63 // pred_check
          %p1671 = pneg %p310
        $region66: #{tpu_custom_call.1} parent=63 // pred_check_branch
          %1673 = sbr.rel (%p1671) target = $region68
        $region67: #{tpu_custom_call.1} parent=63 // pred_region
          %s1674 = smul.u32 2, %s35
          %s1676 = ssub.s32 256, 256
          %1677 = vsyncadd %s1662, %s1676
          %s1678 = smul.addr %s34, 2
          %s1679 = sadd.s32 %s1674, %s1678
          %s1680 = smul.addr %s1679, 128
          %s1681 = scalar_lea.hbm %s11, %s1680
          %s1682 = sshll.u32 %s1665, 4
          %s1683 = int_to_ptr.vmem [resolvable:$true] %s1682
          %1688 = dma.vmem_to_hbm [thread:$0]  %s1683, 256, %s1681, %s1662, 128, 128, 8
        $region68: #{tpu_custom_call.1} parent=63 // pred_fallthru
          _
        // Predicated region
        $region69: #{tpu_custom_call.1} parent=63 // pred_check
          %p1689 = pneg %p338
        $region70: #{tpu_custom_call.1} parent=63 // pred_check_branch
          %1691 = sbr.rel (%p1689) target = $region72
        $region71: #{tpu_custom_call.1} parent=63 // pred_region
          %s1692 = smul.u32 2, %s35
          %s1694 = ssub.s32 256, 256
          %1695 = vsyncadd %s1667, %s1694
          %s1696 = smul.addr %s34, 2
          %s1697 = sadd.s32 %s1692, %s1696
          %s1698 = smul.addr %s1697, 128
          %s1699 = scalar_lea.hbm %s12, %s1698
          %s1700 = sshll.u32 %s1670, 4
          %s1701 = int_to_ptr.vmem [resolvable:$true] %s1700
          %1706 = dma.vmem_to_hbm [thread:$0]  %s1701, 256, %s1699, %s1667, 128, 128, 8
        $region72: #{tpu_custom_call.1} parent=63 // pred_fallthru
          _
      $region64: #{tpu_custom_call.1} parent=5 // pred_fallthru
        _
      %p1707 = scmp.le.s32.totalorder 2, %s25
      // Predicated region
      $region73: #{tpu_custom_call.1} parent=5 // pred_check
        %p1708 = pneg %p1707
      $region74: #{tpu_custom_call.1} parent=5 // pred_check_branch
        %1710 = sbr.rel (%p1708) target = $region76
      $region75: #{tpu_custom_call.1} parent=5 // pred_region
        %s1711 = ssub.s32 %s25, 2
        // Predicated region
        $region77: #{tpu_custom_call.1} parent=75 // pred_check
          %p1712 = pneg %p316
        $region78: #{tpu_custom_call.1} parent=75 // pred_check_branch
          %1714 = sbr.rel (%p1712) target = $region80
        $region79: #{tpu_custom_call.1} parent=75 // pred_region
          %s1715 = sand.u32 %s301, 1
          %s1716 = scalar_lea.sflag [#allocation3], %s1715
          %s1717 = sand.u32 %s301, 1
          %s1718 = smul.addr %s1717, 16
          %s1719 = scalar_lea.vmem [#allocation2], %s1718
          %1720 = dma.done %s1716, 256
        $region80: #{tpu_custom_call.1} parent=75 // pred_fallthru
          _
        // Predicated region
        $region81: #{tpu_custom_call.1} parent=75 // pred_check
          %p1721 = pneg %p344
        $region82: #{tpu_custom_call.1} parent=75 // pred_check_branch
          %1723 = sbr.rel (%p1721) target = $region84
        $region83: #{tpu_custom_call.1} parent=75 // pred_region
          %s1724 = sand.u32 %s329, 1
          %s1725 = scalar_lea.sflag [#allocation5], %s1724
          %s1726 = sand.u32 %s329, 1
          %s1727 = smul.addr %s1726, 16
          %s1728 = scalar_lea.vmem [#allocation4], %s1727
          %1729 = dma.done %s1725, 256
        $region84: #{tpu_custom_call.1} parent=75 // pred_fallthru
          _
      $region76: #{tpu_custom_call.1} parent=5 // pred_fallthru
        _
    $region6: #{tpu_custom_call.1} parent=1 // loop_footer
      %s29 = sadd.s32 1, %s25
    $region7: #{tpu_custom_call.1} parent=1 // loop_footer_branch
      %24 = sbr.rel target = $region3
    $region8: #{tpu_custom_call.1} parent=1 // loop_exit
      _
    %1730 = vsyncpa [#allocation3], 1
    %s1731 = scalar_lea.sflag [#allocation3], 1
    %1732 = vsyncpa %s1731, 1
    %1733 = vsyncpa [#allocation5], 1
    %s1734 = scalar_lea.sflag [#allocation5], 1
    %1735 = vsyncpa %s1734, 1

</llo_original>
